<compile_context>
chip_gen: v5e
topology: v5e:2x2
jax: 0.10.0
libtpu: 0.0.40
codegen_flags: <defaults>
</compile_context>

<pallas_src>
import functools

import jax
import jax.numpy as jnp
from jax.experimental import pallas as pl
from jax.experimental.pallas import tpu as pltpu


def _round_up(n, m):
    return ((n + m - 1) // m) * m


def _activation_dtype():
    """bf16 bias/tanh only where the VPU/EUP have native bf16 paths (v6e / v7x)."""
    kind = jax.devices()[0].device_kind.lower()
    return jnp.bfloat16 if ("v6" in kind or "v7" in kind) else jnp.float32


def _pick_batch_tile(B, batch_tile):
    """Tile aiming at ~2 balanced, 32-row-aligned grid steps (capped at batch_tile)."""
    if B <= 32:
        return max(8, _round_up(B, 8))
    return min(batch_tile, max(32, _round_up(-(-B // 2), 32)))


def _a2c_shared_kernel(x_ref, w1_ref, b1_ref, w2_ref, b2_ref, w3_ref, b3_ref,
                       o_ref, *, chunk):
    """Fused 3-layer tanh MLP on one (tile, S) batch block.

    The tile is processed in `chunk`-row sub-tiles (statically unrolled); rows are
    independent, so the MXU work of chunk i+1 can overlap the EUP tanh of chunk i.
    """
    act_dtype = b1_ref.dtype            # bf16 on v6e/v7x, f32 on v5e/v4
    w1 = w1_ref[...]
    w2 = w2_ref[...]
    w3 = w3_ref[...]
    b1 = b1_ref[...]
    b2 = b2_ref[...]
    b3 = b3_ref[...]

    n_chunks = x_ref.shape[0] // chunk
    for c in range(n_chunks):           # static unroll; chunks are independent
        r = c * chunk
        x = x_ref[pl.ds(r, chunk), :].astype(w1.dtype)
        h1 = jnp.tanh(
            jnp.dot(x, w1, preferred_element_type=jnp.float32).astype(act_dtype) + b1)
        h2 = jnp.tanh(
            jnp.dot(h1.astype(w2.dtype), w2,
                    preferred_element_type=jnp.float32).astype(act_dtype) + b2)
        h3 = jnp.tanh(
            jnp.dot(h2.astype(w3.dtype), w3,
                    preferred_element_type=jnp.float32).astype(act_dtype) + b3)
        o_ref[pl.ds(r, chunk), :] = h3.astype(o_ref.dtype)


def prepare_params(params, act_dtype=None):
    """One-time (outside the hot path) conversion to kernel layout.

    Weights (in, out) -> bf16 MXU operands, W1 zero-padded along the input dim to a
    multiple of 128 lanes; biases cast to the per-chip activation dtype.
    """
    if act_dtype is None:
        act_dtype = _activation_dtype()
    w1, b1, w2, b2, w3, b3 = params
    s = w1.shape[0]
    s_pad = _round_up(s, 128)
    if s_pad != s:
        w1 = jnp.pad(w1, ((0, s_pad - s), (0, 0)))
    return (w1.astype(jnp.bfloat16), b1.astype(act_dtype),
            w2.astype(jnp.bfloat16), b2.astype(act_dtype),
            w3.astype(jnp.bfloat16), b3.astype(act_dtype))


@functools.partial(jax.jit, static_argnames=("batch_tile",))
def a2c_shared_forward(x, w1, b1, w2, b2, w3, b3, *, batch_tile=512):
    """3-layer tanh MLP trunk on TPU via a single fused Pallas kernel.

    x:  (B, state_size)       float32 (or bf16)
    w1: (S_pad, H1) bf16      b1: (1, H1)
    w2: (H1, H2)    bf16      b2: (1, H2)
    w3: (H2, H2)    bf16      b3: (1, H2)
    returns (B, H2) float32
    """
    B, S = x.shape
    S_pad, H1 = w1.shape
    H2 = w3.shape[1]

    if S_pad != S:
        # Fold the K-pad (100 -> 128 lanes) with the bf16 cast into ONE XLA op.
        x = jnp.pad(x.astype(jnp.bfloat16), ((0, 0), (0, S_pad - S)))
    Sx = x.shape[1]

    tile = _pick_batch_tile(B, batch_tile)
    chunk = 32 if tile % 32 == 0 else tile
    grid = (pl.cdiv(B, tile),)          # partial last block is masked by Pallas

    flops = 2 * B * (Sx * H1 + H1 * H2 + H2 * H2)
    transcendentals = B * (H1 + 2 * H2)
    bytes_accessed = (
        B * Sx * x.dtype.itemsize           # x in
        + B * H2 * 4                        # out (f32)
        + 2 * (Sx * H1 + H1 * H2 + H2 * H2) # bf16 weights (resident, one DMA)
        + b1.dtype.itemsize * (H1 + 2 * H2) # biases
    )

    out = pl.pallas_call(
        functools.partial(_a2c_shared_kernel, chunk=chunk),
        out_shape=jax.ShapeDtypeStruct((B, H2), jnp.float32),
        grid_spec=pltpu.PrefetchScalarGridSpec(
            num_scalar_prefetch=0,
            grid=grid,
            in_specs=[
                pl.BlockSpec((tile, Sx), lambda i: (i, 0)),   # x batch tile
                pl.BlockSpec((S_pad, H1), lambda i: (0, 0)),  # layer 1 (resident)
                pl.BlockSpec((1, H1), lambda i: (0, 0)),
                pl.BlockSpec((H1, H2), lambda i: (0, 0)),     # layer 2 (resident)
                pl.BlockSpec((1, H2), lambda i: (0, 0)),
                pl.BlockSpec((H2, H2), lambda i: (0, 0)),     # layer 3 (resident)
                pl.BlockSpec((1, H2), lambda i: (0, 0)),
            ],
            out_specs=pl.BlockSpec((tile, H2), lambda i: (i, 0)),
        ),
        compiler_params=pltpu.CompilerParams(
            dimension_semantics=("parallel",),   # batch axis shards across TCs (v7x)
        ),
        cost_estimate=pl.CostEstimate(
            flops=flops,
            transcendentals=transcendentals,
            bytes_accessed=bytes_accessed,
        ),
    )(x, w1, b1, w2, b2, w3, b3)
    return out


def init_params(key, state_size, hidsize1=512, hidsize2=256):
    """Deterministic init mimicking torch.nn.Linear default (U[-1/sqrt(fan_in), +])."""
    ks = jax.random.split(key, 6)

    def lin(kw, kb, fan_in, fan_out):
        bound = 1.0 / jnp.sqrt(jnp.float32(fan_in))
        w = jax.random.uniform(kw, (fan_in, fan_out), jnp.float32, -bound, bound)
        b = jax.random.uniform(kb, (1, fan_out), jnp.float32, -bound, bound)
        return w, b

    w1, b1 = lin(ks[0], ks[1], state_size, hidsize1)
    w2, b2 = lin(ks[2], ks[3], hidsize1, hidsize2)
    w3, b3 = lin(ks[4], ks[5], hidsize2, hidsize2)
    return w1, b1, w2, b2, w3, b3


# TODO(synk): save()/load() (torch state-dict file I/O) are host-side utilities with
# no kernel equivalent; only forward() is implemented here.

if __name__ == "__main__":
    key = jax.random.PRNGKey(0)
    k_x, k_p = jax.random.split(key)

    # Flatland-like shapes; batch chosen non-divisible by the tile to exercise the
    # masked edge block and give a 2-step (v7x-balanced) parallel grid.
    batch = 300
    state_size = 100
    hidsize1, hidsize2 = 512, 256

    x = jax.random.normal(k_x, (batch, state_size), jnp.float32)
    params_f32 = init_params(k_p, state_size, hidsize1, hidsize2)

    # One-time prep outside the hot path: bf16 weights, K pad 100 -> 128, biases in
    # the per-chip activation dtype.
    params = prepare_params(params_f32)

    out = a2c_shared_forward(x, *params)
    out = jax.block_until_ready(out)

    # Pure-JAX f32 reference of the same semantics (kernel uses bf16 MXU operands and,
    # on v6e/v7x, bf16 bias/tanh, so tolerances are loosened; tanh bounds the error).
    w1, b1, w2, b2, w3, b3 = params_f32
    ref = jnp.tanh(jnp.tanh(jnp.tanh(x @ w1 + b1) @ w2 + b2) @ w3 + b3)
    assert out.shape == (batch, hidsize2)
    max_err = float(jnp.max(jnp.abs(out - ref)))
    assert max_err < 5e-2, f"max abs error {max_err} too large"

    print("KERNEL_OK")
</pallas_src>

<mosaic_0001>
module attributes {stable_mosaic.version = 11 : i64} {
  func.func @_a2c_shared_kernel(%arg0: i32, %arg1: memref<160x128xbf16, #tpu.memory_space<vmem>>, %arg2: memref<128x512xbf16, #tpu.memory_space<vmem>>, %arg3: memref<1x512xf32, #tpu.memory_space<vmem>>, %arg4: memref<512x256xbf16, #tpu.memory_space<vmem>>, %arg5: memref<1x256xf32, #tpu.memory_space<vmem>>, %arg6: memref<256x256xbf16, #tpu.memory_space<vmem>>, %arg7: memref<1x256xf32, #tpu.memory_space<vmem>>, %arg8: memref<160x256xf32, #tpu.memory_space<vmem>>) attributes {dimension_semantics = [#tpu.dimension_semantics<parallel>], iteration_bounds = array<i64: 2>, scalar_prefetch = 0 : i64, scratch_operands = 0 : i64, tpu.core_type = #tpu.core_type<tc>, window_params = [{transform_indices = @transform_0, window_bounds = array<i64: 160, 128>}, {pipeline_mode = #tpu.pipeline_mode<synchronous>, transform_indices = @transform_1, window_bounds = array<i64: 128, 512>}, {pipeline_mode = #tpu.pipeline_mode<synchronous>, transform_indices = @transform_2, window_bounds = array<i64: 1, 512>}, {pipeline_mode = #tpu.pipeline_mode<synchronous>, transform_indices = @transform_3, window_bounds = array<i64: 512, 256>}, {pipeline_mode = #tpu.pipeline_mode<synchronous>, transform_indices = @transform_4, window_bounds = array<i64: 1, 256>}, {pipeline_mode = #tpu.pipeline_mode<synchronous>, transform_indices = @transform_5, window_bounds = array<i64: 256, 256>}, {pipeline_mode = #tpu.pipeline_mode<synchronous>, transform_indices = @transform_6, window_bounds = array<i64: 1, 256>}, {transform_indices = @transform_7, window_bounds = array<i64: 160, 256>}]} {
    %c0 = arith.constant 0 : index
    %c0_0 = arith.constant 0 : index
    %0 = vector.load %arg2[%c0, %c0_0] : memref<128x512xbf16, #tpu.memory_space<vmem>>, vector<128x512xbf16>
    %c0_1 = arith.constant 0 : index
    %c0_2 = arith.constant 0 : index
    %1 = vector.load %arg4[%c0_1, %c0_2] : memref<512x256xbf16, #tpu.memory_space<vmem>>, vector<512x256xbf16>
    %c0_3 = arith.constant 0 : index
    %c0_4 = arith.constant 0 : index
    %2 = vector.load %arg6[%c0_3, %c0_4] : memref<256x256xbf16, #tpu.memory_space<vmem>>, vector<256x256xbf16>
    %c0_5 = arith.constant 0 : index
    %c0_6 = arith.constant 0 : index
    %3 = vector.load %arg3[%c0_5, %c0_6] : memref<1x512xf32, #tpu.memory_space<vmem>>, vector<1x512xf32>
    %c0_7 = arith.constant 0 : index
    %c0_8 = arith.constant 0 : index
    %4 = vector.load %arg5[%c0_7, %c0_8] : memref<1x256xf32, #tpu.memory_space<vmem>>, vector<1x256xf32>
    %c0_9 = arith.constant 0 : index
    %c0_10 = arith.constant 0 : index
    %5 = vector.load %arg7[%c0_9, %c0_10] : memref<1x256xf32, #tpu.memory_space<vmem>>, vector<1x256xf32>
    %c0_11 = arith.constant 0 : index
    %c0_12 = arith.constant 0 : index
    %6 = vector.load %arg1[%c0_11, %c0_12] : memref<160x128xbf16, #tpu.memory_space<vmem>>, vector<32x128xbf16>
    %cst = arith.constant dense<0.000000e+00> : vector<32x512xf32>
    %7 = tpu.matmul %6, %0, %cst {dimension_numbers = #tpu.dot_dimension_numbers<[1], [0], [0], [1], [0, 0, 1, 1], [], []>} : vector<32x128xbf16>, vector<128x512xbf16>, vector<32x512xf32> -> vector<32x512xf32>
    %8 = vector.broadcast %3 : vector<1x512xf32> to vector<32x512xf32>
    %9 = arith.addf %7, %8 : vector<32x512xf32>
    %10 = math.tanh %9 : vector<32x512xf32>
    %11 = arith.truncf %10 : vector<32x512xf32> to vector<32x512xbf16>
    %cst_13 = arith.constant dense<0.000000e+00> : vector<32x256xf32>
    %12 = tpu.matmul %11, %1, %cst_13 {dimension_numbers = #tpu.dot_dimension_numbers<[1], [0], [0], [1], [0, 0, 1, 1], [], []>} : vector<32x512xbf16>, vector<512x256xbf16>, vector<32x256xf32> -> vector<32x256xf32>
    %13 = vector.broadcast %4 : vector<1x256xf32> to vector<32x256xf32>
    %14 = arith.addf %12, %13 : vector<32x256xf32>
    %15 = math.tanh %14 : vector<32x256xf32>
    %16 = arith.truncf %15 : vector<32x256xf32> to vector<32x256xbf16>
    %cst_14 = arith.constant dense<0.000000e+00> : vector<32x256xf32>
    %17 = tpu.matmul %16, %2, %cst_14 {dimension_numbers = #tpu.dot_dimension_numbers<[1], [0], [0], [1], [0, 0, 1, 1], [], []>} : vector<32x256xbf16>, vector<256x256xbf16>, vector<32x256xf32> -> vector<32x256xf32>
    %18 = vector.broadcast %5 : vector<1x256xf32> to vector<32x256xf32>
    %19 = arith.addf %17, %18 : vector<32x256xf32>
    %20 = math.tanh %19 : vector<32x256xf32>
    %c0_15 = arith.constant 0 : index
    %c0_16 = arith.constant 0 : index
    %21 = vector.load %arg8[%c0_15, %c0_16] : memref<160x256xf32, #tpu.memory_space<vmem>>, vector<32x256xf32>
    tpu.vector_store %arg8[%c0_15, %c0_16], %20 {strides = array<i32>} : memref<160x256xf32, #tpu.memory_space<vmem>>, vector<32x256xf32>,
    %c32 = arith.constant 32 : index
    %c0_17 = arith.constant 0 : index
    %22 = vector.load %arg1[%c32, %c0_17] : memref<160x128xbf16, #tpu.memory_space<vmem>>, vector<32x128xbf16>
    %cst_18 = arith.constant dense<0.000000e+00> : vector<32x512xf32>
    %23 = tpu.matmul %22, %0, %cst_18 {dimension_numbers = #tpu.dot_dimension_numbers<[1], [0], [0], [1], [0, 0, 1, 1], [], []>} : vector<32x128xbf16>, vector<128x512xbf16>, vector<32x512xf32> -> vector<32x512xf32>
    %24 = vector.broadcast %3 : vector<1x512xf32> to vector<32x512xf32>
    %25 = arith.addf %23, %24 : vector<32x512xf32>
    %26 = math.tanh %25 : vector<32x512xf32>
    %27 = arith.truncf %26 : vector<32x512xf32> to vector<32x512xbf16>
    %cst_19 = arith.constant dense<0.000000e+00> : vector<32x256xf32>
    %28 = tpu.matmul %27, %1, %cst_19 {dimension_numbers = #tpu.dot_dimension_numbers<[1], [0], [0], [1], [0, 0, 1, 1], [], []>} : vector<32x512xbf16>, vector<512x256xbf16>, vector<32x256xf32> -> vector<32x256xf32>
    %29 = vector.broadcast %4 : vector<1x256xf32> to vector<32x256xf32>
    %30 = arith.addf %28, %29 : vector<32x256xf32>
    %31 = math.tanh %30 : vector<32x256xf32>
    %32 = arith.truncf %31 : vector<32x256xf32> to vector<32x256xbf16>
    %cst_20 = arith.constant dense<0.000000e+00> : vector<32x256xf32>
    %33 = tpu.matmul %32, %2, %cst_20 {dimension_numbers = #tpu.dot_dimension_numbers<[1], [0], [0], [1], [0, 0, 1, 1], [], []>} : vector<32x256xbf16>, vector<256x256xbf16>, vector<32x256xf32> -> vector<32x256xf32>
    %34 = vector.broadcast %5 : vector<1x256xf32> to vector<32x256xf32>
    %35 = arith.addf %33, %34 : vector<32x256xf32>
    %36 = math.tanh %35 : vector<32x256xf32>
    %c32_21 = arith.constant 32 : index
    %c0_22 = arith.constant 0 : index
    %37 = vector.load %arg8[%c32_21, %c0_22] : memref<160x256xf32, #tpu.memory_space<vmem>>, vector<32x256xf32>
    tpu.vector_store %arg8[%c32_21, %c0_22], %36 {strides = array<i32>} : memref<160x256xf32, #tpu.memory_space<vmem>>, vector<32x256xf32>,
    %c64 = arith.constant 64 : index
    %c0_23 = arith.constant 0 : index
    %38 = vector.load %arg1[%c64, %c0_23] : memref<160x128xbf16, #tpu.memory_space<vmem>>, vector<32x128xbf16>
    %cst_24 = arith.constant dense<0.000000e+00> : vector<32x512xf32>
    %39 = tpu.matmul %38, %0, %cst_24 {dimension_numbers = #tpu.dot_dimension_numbers<[1], [0], [0], [1], [0, 0, 1, 1], [], []>} : vector<32x128xbf16>, vector<128x512xbf16>, vector<32x512xf32> -> vector<32x512xf32>
    %40 = vector.broadcast %3 : vector<1x512xf32> to vector<32x512xf32>
    %41 = arith.addf %39, %40 : vector<32x512xf32>
    %42 = math.tanh %41 : vector<32x512xf32>
    %43 = arith.truncf %42 : vector<32x512xf32> to vector<32x512xbf16>
    %cst_25 = arith.constant dense<0.000000e+00> : vector<32x256xf32>
    %44 = tpu.matmul %43, %1, %cst_25 {dimension_numbers = #tpu.dot_dimension_numbers<[1], [0], [0], [1], [0, 0, 1, 1], [], []>} : vector<32x512xbf16>, vector<512x256xbf16>, vector<32x256xf32> -> vector<32x256xf32>
    %45 = vector.broadcast %4 : vector<1x256xf32> to vector<32x256xf32>
    %46 = arith.addf %44, %45 : vector<32x256xf32>
    %47 = math.tanh %46 : vector<32x256xf32>
    %48 = arith.truncf %47 : vector<32x256xf32> to vector<32x256xbf16>
    %cst_26 = arith.constant dense<0.000000e+00> : vector<32x256xf32>
    %49 = tpu.matmul %48, %2, %cst_26 {dimension_numbers = #tpu.dot_dimension_numbers<[1], [0], [0], [1], [0, 0, 1, 1], [], []>} : vector<32x256xbf16>, vector<256x256xbf16>, vector<32x256xf32> -> vector<32x256xf32>
    %50 = vector.broadcast %5 : vector<1x256xf32> to vector<32x256xf32>
    %51 = arith.addf %49, %50 : vector<32x256xf32>
    %52 = math.tanh %51 : vector<32x256xf32>
    %c64_27 = arith.constant 64 : index
    %c0_28 = arith.constant 0 : index
    %53 = vector.load %arg8[%c64_27, %c0_28] : memref<160x256xf32, #tpu.memory_space<vmem>>, vector<32x256xf32>
    tpu.vector_store %arg8[%c64_27, %c0_28], %52 {strides = array<i32>} : memref<160x256xf32, #tpu.memory_space<vmem>>, vector<32x256xf32>,
    %c96 = arith.constant 96 : index
    %c0_29 = arith.constant 0 : index
    %54 = vector.load %arg1[%c96, %c0_29] : memref<160x128xbf16, #tpu.memory_space<vmem>>, vector<32x128xbf16>
    %cst_30 = arith.constant dense<0.000000e+00> : vector<32x512xf32>
    %55 = tpu.matmul %54, %0, %cst_30 {dimension_numbers = #tpu.dot_dimension_numbers<[1], [0], [0], [1], [0, 0, 1, 1], [], []>} : vector<32x128xbf16>, vector<128x512xbf16>, vector<32x512xf32> -> vector<32x512xf32>
    %56 = vector.broadcast %3 : vector<1x512xf32> to vector<32x512xf32>
    %57 = arith.addf %55, %56 : vector<32x512xf32>
    %58 = math.tanh %57 : vector<32x512xf32>
    %59 = arith.truncf %58 : vector<32x512xf32> to vector<32x512xbf16>
    %cst_31 = arith.constant dense<0.000000e+00> : vector<32x256xf32>
    %60 = tpu.matmul %59, %1, %cst_31 {dimension_numbers = #tpu.dot_dimension_numbers<[1], [0], [0], [1], [0, 0, 1, 1], [], []>} : vector<32x512xbf16>, vector<512x256xbf16>, vector<32x256xf32> -> vector<32x256xf32>
    %61 = vector.broadcast %4 : vector<1x256xf32> to vector<32x256xf32>
    %62 = arith.addf %60, %61 : vector<32x256xf32>
    %63 = math.tanh %62 : vector<32x256xf32>
    %64 = arith.truncf %63 : vector<32x256xf32> to vector<32x256xbf16>
    %cst_32 = arith.constant dense<0.000000e+00> : vector<32x256xf32>
    %65 = tpu.matmul %64, %2, %cst_32 {dimension_numbers = #tpu.dot_dimension_numbers<[1], [0], [0], [1], [0, 0, 1, 1], [], []>} : vector<32x256xbf16>, vector<256x256xbf16>, vector<32x256xf32> -> vector<32x256xf32>
    %66 = vector.broadcast %5 : vector<1x256xf32> to vector<32x256xf32>
    %67 = arith.addf %65, %66 : vector<32x256xf32>
    %68 = math.tanh %67 : vector<32x256xf32>
    %c96_33 = arith.constant 96 : index
    %c0_34 = arith.constant 0 : index
    %69 = vector.load %arg8[%c96_33, %c0_34] : memref<160x256xf32, #tpu.memory_space<vmem>>, vector<32x256xf32>
    tpu.vector_store %arg8[%c96_33, %c0_34], %68 {strides = array<i32>} : memref<160x256xf32, #tpu.memory_space<vmem>>, vector<32x256xf32>,
    %c128 = arith.constant 128 : index
    %c0_35 = arith.constant 0 : index
    %70 = vector.load %arg1[%c128, %c0_35] : memref<160x128xbf16, #tpu.memory_space<vmem>>, vector<32x128xbf16>
    %cst_36 = arith.constant dense<0.000000e+00> : vector<32x512xf32>
    %71 = tpu.matmul %70, %0, %cst_36 {dimension_numbers = #tpu.dot_dimension_numbers<[1], [0], [0], [1], [0, 0, 1, 1], [], []>} : vector<32x128xbf16>, vector<128x512xbf16>, vector<32x512xf32> -> vector<32x512xf32>
    %72 = vector.broadcast %3 : vector<1x512xf32> to vector<32x512xf32>
    %73 = arith.addf %71, %72 : vector<32x512xf32>
    %74 = math.tanh %73 : vector<32x512xf32>
    %75 = arith.truncf %74 : vector<32x512xf32> to vector<32x512xbf16>
    %cst_37 = arith.constant dense<0.000000e+00> : vector<32x256xf32>
    %76 = tpu.matmul %75, %1, %cst_37 {dimension_numbers = #tpu.dot_dimension_numbers<[1], [0], [0], [1], [0, 0, 1, 1], [], []>} : vector<32x512xbf16>, vector<512x256xbf16>, vector<32x256xf32> -> vector<32x256xf32>
    %77 = vector.broadcast %4 : vector<1x256xf32> to vector<32x256xf32>
    %78 = arith.addf %76, %77 : vector<32x256xf32>
    %79 = math.tanh %78 : vector<32x256xf32>
    %80 = arith.truncf %79 : vector<32x256xf32> to vector<32x256xbf16>
    %cst_38 = arith.constant dense<0.000000e+00> : vector<32x256xf32>
    %81 = tpu.matmul %80, %2, %cst_38 {dimension_numbers = #tpu.dot_dimension_numbers<[1], [0], [0], [1], [0, 0, 1, 1], [], []>} : vector<32x256xbf16>, vector<256x256xbf16>, vector<32x256xf32> -> vector<32x256xf32>
    %82 = vector.broadcast %5 : vector<1x256xf32> to vector<32x256xf32>
    %83 = arith.addf %81, %82 : vector<32x256xf32>
    %84 = math.tanh %83 : vector<32x256xf32>
    %c128_39 = arith.constant 128 : index
    %c0_40 = arith.constant 0 : index
    %85 = vector.load %arg8[%c128_39, %c0_40] : memref<160x256xf32, #tpu.memory_space<vmem>>, vector<32x256xf32>
    tpu.vector_store %arg8[%c128_39, %c0_40], %84 {strides = array<i32>} : memref<160x256xf32, #tpu.memory_space<vmem>>, vector<32x256xf32>,
    return
  }
  func.func @transform_0(%arg0: i32) -> (i32, i32) {
    %c0_i32 = arith.constant 0 : i32
    %c0_i32_0 = arith.constant 0 : i32
    return %arg0, %c0_i32 : i32, i32
  }
  func.func @transform_1(%arg0: i32) -> (i32, i32) {
    %c0_i32 = arith.constant 0 : i32
    %c0_i32_0 = arith.constant 0 : i32
    %c0_i32_1 = arith.constant 0 : i32
    return %c0_i32, %c0_i32_0 : i32, i32
  }
  func.func @transform_2(%arg0: i32) -> (i32, i32) {
    %c0_i32 = arith.constant 0 : i32
    %c0_i32_0 = arith.constant 0 : i32
    %c0_i32_1 = arith.constant 0 : i32
    return %c0_i32, %c0_i32_0 : i32, i32
  }
  func.func @transform_3(%arg0: i32) -> (i32, i32) {
    %c0_i32 = arith.constant 0 : i32
    %c0_i32_0 = arith.constant 0 : i32
    %c0_i32_1 = arith.constant 0 : i32
    return %c0_i32, %c0_i32_0 : i32, i32
  }
  func.func @transform_4(%arg0: i32) -> (i32, i32) {
    %c0_i32 = arith.constant 0 : i32
    %c0_i32_0 = arith.constant 0 : i32
    %c0_i32_1 = arith.constant 0 : i32
    return %c0_i32, %c0_i32_0 : i32, i32
  }
  func.func @transform_5(%arg0: i32) -> (i32, i32) {
    %c0_i32 = arith.constant 0 : i32
    %c0_i32_0 = arith.constant 0 : i32
    %c0_i32_1 = arith.constant 0 : i32
    return %c0_i32, %c0_i32_0 : i32, i32
  }
  func.func @transform_6(%arg0: i32) -> (i32, i32) {
    %c0_i32 = arith.constant 0 : i32
    %c0_i32_0 = arith.constant 0 : i32
    %c0_i32_1 = arith.constant 0 : i32
    return %c0_i32, %c0_i32_0 : i32, i32
  }
  func.func @transform_7(%arg0: i32) -> (i32, i32) {
    %c0_i32 = arith.constant 0 : i32
    %c0_i32_0 = arith.constant 0 : i32
    return %arg0, %c0_i32 : i32, i32
  }
}

</mosaic_0001>

<llo_original>
// kernel: a2c_shared_forward.1
$region0: #{a2c_shared_forward.1}
  #allocation0 [shape = 'u32[]', space=smem, size = 0x4, offset = 0x4, fixed_abs, tag = 'smem constant byte address 0x4 - core index']
  #allocation1 [shape = 'u32[72,128]{1,0:T(1,128)}', space=vmem, size = 0x9000, scoped, tag = 'internal scratch']
  %s0 = inlined_call_operand.vmem [shape: bf16[300,128], index: 0, kind: input, shape index: {}]
  %s1 = inlined_call_operand.hbm [shape: bf16[128,512], index: 1, kind: input, shape index: {}]
  %s2 = inlined_call_operand.vmem [shape: f32[1,512], index: 2, kind: input, shape index: {}]
  %s3 = inlined_call_operand.vmem [shape: bf16[512,256], index: 3, kind: input, shape index: {}]
  %s4 = inlined_call_operand.vmem [shape: f32[1,256], index: 4, kind: input, shape index: {}]
  %s5 = inlined_call_operand.hbm [shape: bf16[256,256], index: 5, kind: input, shape index: {}]
  %s6 = inlined_call_operand.vmem [shape: f32[1,256], index: 6, kind: input, shape index: {}]
  %s7 = inlined_call_operand.hbm [shape: f32[300,256], index: 7, kind: output, shape index: {}]
  %s8 = sld [smem:[#allocation0]]
  $region69: #{a2c_shared_forward.1} parent=0
    _
  %s10 = ssub.s32 1, %s8
  %s11 = scalar_select 0, %s10, %s8
  $region1: #{a2c_shared_forward.1} parent=0
    #allocation2 [shape = 'u8[131072]{0}', space=vmem, size = 0x20000, scoped, tag = 'input window, operand 1, single buffered']
    #allocation3 [shape = 's32[2]{0}', space=sflag, size = 0x8, scoped, tag = 'scoped memory for a2c_shared_forward.1']
    #allocation4 [shape = 's32[2]{0}', space=sflag, size = 0x8, scoped, tag = 'scoped memory for a2c_shared_forward.1']
    #allocation5 [shape = 'u8[131072]{0}', space=vmem, size = 0x20000, scoped, tag = 'input window, operand 5, single buffered']
    #allocation6 [shape = 's32[1]{0}', space=sflag, size = 0x4, scoped, tag = 'scoped memory for a2c_shared_forward.1']
    #allocation7 [shape = 'u8[327680]{0}', space=vmem, size = 0x50000, scoped, tag = 'output window, operand 0']
    %12 = vsyncpa [#allocation3], 0
    %13 = vsyncpa [#allocation6], 0
    %14 = vsyncpa [#allocation4], 0
    %s15 = scalar_lea.sflag [#allocation4], 1
    %16 = vsyncpa %s15, 0
    loop: start=0, step=1, limit=4
    $region2: #{a2c_shared_forward.1} parent=1 // loop_pre_header
      _
    $region3: #{a2c_shared_forward.1} parent=1 // loop_header
      %s18 = sphi 0, %s22
      %p19 = scmp.ge.s32.totalorder %s18, 4
      %s28 = sphi 0, %s30
      %s31 = sphi 0, %s28
      %s32 = sphi 0, %s31
      %s48 = sphi 0, %s32
      %s52 = sphi 0, %s52
      %s54 = sphi 0, %s52
      %s55 = sphi 0, %s54
      %s69 = sphi 0, %s55
      %s73 = sphi 0, %s73
      %s75 = sphi 0, %s73
      %s76 = sphi 0, %s75
      %s90 = sphi 0, %s76
      %s94 = sphi 0, %s94
      %s96 = sphi 0, %s94
      %s97 = sphi 0, %s96
      %s111 = sphi 0, %s97
      %s115 = sphi 0, %s115
      %s117 = sphi 0, %s115
      %s118 = sphi 0, %s117
      %s132 = sphi 0, %s118
      %s136 = sphi 0, %s136
      %s138 = sphi 0, %s136
      %s139 = sphi 0, %s138
      %s153 = sphi 0, %s139
      %s157 = sphi 0, %s157
      %s159 = sphi 0, %s157
      %s160 = sphi 0, %s159
      %s174 = sphi 0, %s160
      %s180 = sphi 0, %s182
      %s183 = sphi 0, %s180
      %s184 = sphi 0, %s183
      %s200 = sphi 0, %s184
    $region4: #{a2c_shared_forward.1} parent=1 // loop_header_branch
      %21 = sbr.rel (%p19) target = $region8
    $region5: #{a2c_shared_forward.1} parent=1 // loop_body
      %s23 = ssub.s32 %s18, 1
      %s24 = ssub.s32 %s18, 2
      %s25 = sadd.s32 %s18, 1
      %s26 = ssub.s32 %s18, %s25
      %p27 = scmp.eq.s32.totalorder %s26, 0
      %s29 = sadd.s32 %s28, 1
      %s30 = scalar_select %p27, %s28, %s29
      %p33 = pneg %p27
      %p34 = scmp.eq.s32.totalorder %s18, 1
      %p35 = por %p33, %p34
      %p36 = scmp.ne.s32.totalorder %s28, %s31
      %p37 = scmp.eq.s32.totalorder %s18, 0
      %p38 = por %p36, %p37
      %p39 = scmp.ne.s32.totalorder %s28, %s31
      %p40 = scmp.eq.s32.totalorder %s23, 1
      %p41 = por %p39, %p40
      %p42 = scmp.ne.s32.totalorder %s31, %s32
      %p43 = scmp.eq.s32.totalorder %s23, 0
      %p44 = por %p42, %p43
      %p45 = scmp.ne.s32.totalorder %s31, %s32
      %p46 = scmp.eq.s32.totalorder %s24, 1
      %p47 = por %p45, %p46
      %p49 = scmp.ne.s32.totalorder %s32, %s48
      %p50 = scmp.eq.s32.totalorder %s24, 0
      %p51 = por %p49, %p50
      %s53 = sadd.s32 %s52, 1
      %p56 = scmp.eq.s32.totalorder %s18, 1
      %p57 = scmp.ne.s32.totalorder %s52, %s54
      %p58 = scmp.eq.s32.totalorder %s18, 0
      %p59 = por %p57, %p58
      %p60 = scmp.ne.s32.totalorder %s52, %s54
      %p61 = scmp.eq.s32.totalorder %s23, 1
      %p62 = por %p60, %p61
      %p63 = scmp.ne.s32.totalorder %s54, %s55
      %p64 = scmp.eq.s32.totalorder %s23, 0
      %p65 = por %p63, %p64
      %p66 = scmp.ne.s32.totalorder %s54, %s55
      %p67 = scmp.eq.s32.totalorder %s24, 1
      %p68 = por %p66, %p67
      %p70 = scmp.ne.s32.totalorder %s55, %s69
      %p71 = scmp.eq.s32.totalorder %s24, 0
      %p72 = por %p70, %p71
      %s74 = sadd.s32 %s73, 1
      %p77 = scmp.eq.s32.totalorder %s18, 1
      %p78 = scmp.ne.s32.totalorder %s73, %s75
      %p79 = scmp.eq.s32.totalorder %s18, 0
      %p80 = por %p78, %p79
      %p81 = scmp.ne.s32.totalorder %s73, %s75
      %p82 = scmp.eq.s32.totalorder %s23, 1
      %p83 = por %p81, %p82
      %p84 = scmp.ne.s32.totalorder %s75, %s76
      %p85 = scmp.eq.s32.totalorder %s23, 0
      %p86 = por %p84, %p85
      %p87 = scmp.ne.s32.totalorder %s75, %s76
      %p88 = scmp.eq.s32.totalorder %s24, 1
      %p89 = por %p87, %p88
      %p91 = scmp.ne.s32.totalorder %s76, %s90
      %p92 = scmp.eq.s32.totalorder %s24, 0
      %p93 = por %p91, %p92
      %s95 = sadd.s32 %s94, 1
      %p98 = scmp.eq.s32.totalorder %s18, 1
      %p99 = scmp.ne.s32.totalorder %s94, %s96
      %p100 = scmp.eq.s32.totalorder %s18, 0
      %p101 = por %p99, %p100
      %p102 = scmp.ne.s32.totalorder %s94, %s96
      %p103 = scmp.eq.s32.totalorder %s23, 1
      %p104 = por %p102, %p103
      %p105 = scmp.ne.s32.totalorder %s96, %s97
      %p106 = scmp.eq.s32.totalorder %s23, 0
      %p107 = por %p105, %p106
      %p108 = scmp.ne.s32.totalorder %s96, %s97
      %p109 = scmp.eq.s32.totalorder %s24, 1
      %p110 = por %p108, %p109
      %p112 = scmp.ne.s32.totalorder %s97, %s111
      %p113 = scmp.eq.s32.totalorder %s24, 0
      %p114 = por %p112, %p113
      %s116 = sadd.s32 %s115, 1
      %p119 = scmp.eq.s32.totalorder %s18, 1
      %p120 = scmp.ne.s32.totalorder %s115, %s117
      %p121 = scmp.eq.s32.totalorder %s18, 0
      %p122 = por %p120, %p121
      %p123 = scmp.ne.s32.totalorder %s115, %s117
      %p124 = scmp.eq.s32.totalorder %s23, 1
      %p125 = por %p123, %p124
      %p126 = scmp.ne.s32.totalorder %s117, %s118
      %p127 = scmp.eq.s32.totalorder %s23, 0
      %p128 = por %p126, %p127
      %p129 = scmp.ne.s32.totalorder %s117, %s118
      %p130 = scmp.eq.s32.totalorder %s24, 1
      %p131 = por %p129, %p130
      %p133 = scmp.ne.s32.totalorder %s118, %s132
      %p134 = scmp.eq.s32.totalorder %s24, 0
      %p135 = por %p133, %p134
      %s137 = sadd.s32 %s136, 1
      %p140 = scmp.eq.s32.totalorder %s18, 1
      %p141 = scmp.ne.s32.totalorder %s136, %s138
      %p142 = scmp.eq.s32.totalorder %s18, 0
      %p143 = por %p141, %p142
      %p144 = scmp.ne.s32.totalorder %s136, %s138
      %p145 = scmp.eq.s32.totalorder %s23, 1
      %p146 = por %p144, %p145
      %p147 = scmp.ne.s32.totalorder %s138, %s139
      %p148 = scmp.eq.s32.totalorder %s23, 0
      %p149 = por %p147, %p148
      %p150 = scmp.ne.s32.totalorder %s138, %s139
      %p151 = scmp.eq.s32.totalorder %s24, 1
      %p152 = por %p150, %p151
      %p154 = scmp.ne.s32.totalorder %s139, %s153
      %p155 = scmp.eq.s32.totalorder %s24, 0
      %p156 = por %p154, %p155
      %s158 = sadd.s32 %s157, 1
      %p161 = scmp.eq.s32.totalorder %s18, 1
      %p162 = scmp.ne.s32.totalorder %s157, %s159
      %p163 = scmp.eq.s32.totalorder %s18, 0
      %p164 = por %p162, %p163
      %p165 = scmp.ne.s32.totalorder %s157, %s159
      %p166 = scmp.eq.s32.totalorder %s23, 1
      %p167 = por %p165, %p166
      %p168 = scmp.ne.s32.totalorder %s159, %s160
      %p169 = scmp.eq.s32.totalorder %s23, 0
      %p170 = por %p168, %p169
      %p171 = scmp.ne.s32.totalorder %s159, %s160
      %p172 = scmp.eq.s32.totalorder %s24, 1
      %p173 = por %p171, %p172
      %p175 = scmp.ne.s32.totalorder %s160, %s174
      %p176 = scmp.eq.s32.totalorder %s24, 0
      %p177 = por %p175, %p176
      %s178 = ssub.s32 %s18, %s25
      %p179 = scmp.eq.s32.totalorder %s178, 0
      %s181 = sadd.s32 %s180, 1
      %s182 = scalar_select %p179, %s180, %s181
      %p185 = pneg %p179
      %p186 = scmp.eq.s32.totalorder %s18, 1
      %p187 = por %p185, %p186
      %p188 = scmp.ne.s32.totalorder %s180, %s183
      %p189 = scmp.eq.s32.totalorder %s18, 0
      %p190 = por %p188, %p189
      %p191 = scmp.ne.s32.totalorder %s180, %s183
      %p192 = scmp.eq.s32.totalorder %s23, 1
      %p193 = por %p191, %p192
      %p194 = scmp.ne.s32.totalorder %s183, %s184
      %p195 = scmp.eq.s32.totalorder %s23, 0
      %p196 = por %p194, %p195
      %p197 = scmp.ne.s32.totalorder %s183, %s184
      %p198 = scmp.eq.s32.totalorder %s24, 1
      %p199 = por %p197, %p198
      %p201 = scmp.ne.s32.totalorder %s184, %s200
      %p202 = scmp.eq.s32.totalorder %s24, 0
      %p203 = por %p201, %p202
      %p204 = scmp.le.s32.totalorder 1, %s18
      %p205 = scmp.lt.s32.totalorder %s18, 3
      %p206 = pnand %p204, %p205
      %p207 = pneg %p206
      // Predicated region
      $region9: #{a2c_shared_forward.1} parent=5 // pred_check
        _
      $region10: #{a2c_shared_forward.1} parent=5 // pred_check_branch
        %209 = sbr.rel (%p206) target = $region12
      $region11: #{a2c_shared_forward.1} parent=5 // pred_region
        %s210 = ssub.s32 %s18, 1
        // Predicated region
        $region13: #{a2c_shared_forward.1} parent=11 // pred_check
          %p211 = pneg %p65
        $region14: #{a2c_shared_forward.1} parent=11 // pred_check_branch
          %213 = sbr.rel (%p211) target = $region16
        $region15: #{a2c_shared_forward.1} parent=11 // pred_region
          %215 = vsyncadd [#allocation3], 0
          %s216 = sshll.u32 %s1, 4
          %s217 = int_to_ptr.hbm [resolvable:$true] %s216
          %s218 = sshll.u32 [#allocation2], 4
          %s219 = int_to_ptr.vmem [resolvable:$true] %s218
          %224 = dma.hbm_to_vmem [thread:$0]  %s217, 4096, %s219, [#allocation3], 256, 256, 16
        $region16: #{a2c_shared_forward.1} parent=11 // pred_fallthru
          _
        // Predicated region
        $region17: #{a2c_shared_forward.1} parent=11 // pred_check
          %p225 = pneg %p86
        $region18: #{a2c_shared_forward.1} parent=11 // pred_check_branch
          %227 = sbr.rel (%p225) target = $region20
        $region19: #{a2c_shared_forward.1} parent=11 // pred_region
          _
        $region20: #{a2c_shared_forward.1} parent=11 // pred_fallthru
          _
        // Predicated region
        $region21: #{a2c_shared_forward.1} parent=11 // pred_check
          %p228 = pneg %p107
        $region22: #{a2c_shared_forward.1} parent=11 // pred_check_branch
          %230 = sbr.rel (%p228) target = $region24
        $region23: #{a2c_shared_forward.1} parent=11 // pred_region
          _
        $region24: #{a2c_shared_forward.1} parent=11 // pred_fallthru
          _
        // Predicated region
        $region25: #{a2c_shared_forward.1} parent=11 // pred_check
          %p231 = pneg %p128
        $region26: #{a2c_shared_forward.1} parent=11 // pred_check_branch
          %233 = sbr.rel (%p231) target = $region28
        $region27: #{a2c_shared_forward.1} parent=11 // pred_region
          _
        $region28: #{a2c_shared_forward.1} parent=11 // pred_fallthru
          _
        // Predicated region
        $region29: #{a2c_shared_forward.1} parent=11 // pred_check
          %p234 = pneg %p149
        $region30: #{a2c_shared_forward.1} parent=11 // pred_check_branch
          %236 = sbr.rel (%p234) target = $region32
        $region31: #{a2c_shared_forward.1} parent=11 // pred_region
          %238 = vsyncadd [#allocation6], 0
          %s239 = sshll.u32 %s5, 4
          %s240 = int_to_ptr.hbm [resolvable:$true] %s239
          %s241 = sshll.u32 [#allocation5], 4
          %s242 = int_to_ptr.vmem [resolvable:$true] %s241
          %247 = dma.hbm_to_vmem [thread:$0]  %s240, 4096, %s242, [#allocation6], 128, 128, 8
        $region32: #{a2c_shared_forward.1} parent=11 // pred_fallthru
          _
        // Predicated region
        $region33: #{a2c_shared_forward.1} parent=11 // pred_check
          %p248 = pneg %p170
        $region34: #{a2c_shared_forward.1} parent=11 // pred_check_branch
          %250 = sbr.rel (%p248) target = $region36
        $region35: #{a2c_shared_forward.1} parent=11 // pred_region
          _
        $region36: #{a2c_shared_forward.1} parent=11 // pred_fallthru
          _
      $region12: #{a2c_shared_forward.1} parent=5 // pred_fallthru
        _
      %p251 = scmp.lt.s32.totalorder %s18, 2
      // Predicated region
      $region37: #{a2c_shared_forward.1} parent=5 // pred_check
        %p252 = pneg %p251
      $region38: #{a2c_shared_forward.1} parent=5 // pred_check_branch
        %254 = sbr.rel (%p252) target = $region40
      $region39: #{a2c_shared_forward.1} parent=5 // pred_region
        // Predicated region
        $region41: #{a2c_shared_forward.1} parent=39 // pred_check
          %p255 = pneg %p38
        $region42: #{a2c_shared_forward.1} parent=39 // pred_check_branch
          %257 = sbr.rel (%p255) target = $region44
        $region43: #{a2c_shared_forward.1} parent=39 // pred_region
          %s258 = smul.u32 20, %s18
          %s259 = ssub.s32 38, %s258
          %p260 = scmp.lt.s32.totalorder %s259, 20
          %s261 = scalar_select %p260, %s259, 20
          %s262 = smul.u32 4, %s261
          %p263 = scmp.lt.s32.totalorder %s258, 37
          %s264 = scalar_select %p263, %s258, 37
          %s265 = smul.addr %s264, 4
          %s266 = scalar_lea.vmem %s0, %s265
          %s267 = smul.u32 20, %s18
          %s268 = ssub.s32 38, %s267
          %p269 = scmp.lt.s32.totalorder %s268, 20
          %s270 = scalar_select %p269, %s268, 20
          %s271 = smul.u32 4, %s270
        $region44: #{a2c_shared_forward.1} parent=39 // pred_fallthru
          _
      $region40: #{a2c_shared_forward.1} parent=5 // pred_fallthru
        _
      %p272 = scmp.le.s32.totalorder 1, %s18
      %p273 = scmp.lt.s32.totalorder %s18, 3
      %p274 = pnand %p272, %p273
      %p275 = pneg %p274
      // Predicated region
      $region45: #{a2c_shared_forward.1} parent=5 // pred_check
        _
      $region46: #{a2c_shared_forward.1} parent=5 // pred_check_branch
        %277 = sbr.rel (%p274) target = $region48
      $region47: #{a2c_shared_forward.1} parent=5 // pred_region
        %s278 = ssub.s32 %s18, 1
        // Predicated region
        $region49: #{a2c_shared_forward.1} parent=47 // pred_check
          %p279 = pneg %p65
        $region50: #{a2c_shared_forward.1} parent=47 // pred_check_branch
          %281 = sbr.rel (%p279) target = $region52
        $region51: #{a2c_shared_forward.1} parent=47 // pred_region
          %283 = dma.done [#allocation3], 4096
        $region52: #{a2c_shared_forward.1} parent=47 // pred_fallthru
          _
        // Predicated region
        $region53: #{a2c_shared_forward.1} parent=47 // pred_check
          %p284 = pneg %p149
        $region54: #{a2c_shared_forward.1} parent=47 // pred_check_branch
          %286 = sbr.rel (%p284) target = $region56
        $region55: #{a2c_shared_forward.1} parent=47 // pred_region
          %288 = dma.done [#allocation6], 4096
        $region56: #{a2c_shared_forward.1} parent=47 // pred_fallthru
          _
        %s289 = smul.u32 20, %s23
        %s290 = ssub.s32 38, %s289
        %p291 = scmp.lt.s32.totalorder %s290, 20
        %s292 = scalar_select %p291, %s290, 20
        %s293 = smul.u32 4, %s292
        %p294 = scmp.lt.s32.totalorder %s289, 37
        %s295 = scalar_select %p294, %s289, 37
        %s296 = smul.addr %s295, 4
        %s297 = scalar_lea.vmem %s0, %s296
        %p298 = pneg %p44
        %p299 = pneg %p41
        %p300 = pneg %p65
        %p301 = pneg %p62
        %p302 = pneg %p86
        %p303 = pneg %p83
        %p304 = pneg %p107
        %p305 = pneg %p104
        %p306 = pneg %p128
        %p307 = pneg %p125
        %p308 = pneg %p149
        %p309 = pneg %p146
        %p310 = pneg %p170
        %p311 = pneg %p167
        %p312 = pneg %p196
        %p313 = pneg %p193
        %s314 = sand.u32 %s183, 1
        %s315 = scalar_lea.sflag [#allocation4], %s314
        %s316 = sand.u32 %s183, 1
        %s317 = smul.addr %s316, 320
        %s318 = scalar_lea.vmem [#allocation7], %s317
        %s319 = smul.u32 20, %s23
        %s320 = ssub.s32 38, %s319
        %p321 = scmp.lt.s32.totalorder %s320, 20
        %s322 = scalar_select %p321, %s320, 20
        %s323 = smul.u32 4, %s322
        %p324 = scmp.lt.s32.totalorder %s319, 37
        %s325 = scalar_select %p324, %s319, 37
        %s326 = smul.addr %s325, 4
        %s327 = scalar_lea.vmem %s0, %s326
        %s328 = smul.u32 20, %s23
        %s329 = ssub.s32 38, %s328
        %p330 = scmp.lt.s32.totalorder %s329, 20
        %s331 = scalar_select %p330, %s329, 20
        %s332 = smul.u32 4, %s331
        %s333 = smul.u32 20, %s23
        %s334 = ssub.s32 38, %s333
        %p335 = scmp.lt.s32.totalorder %s334, 20
        %s336 = scalar_select %p335, %s334, 20
        %s337 = smul.u32 8, %s336
        %s338 = smul.u32 %s337, 2
        %v339 = vld [vmem:[#allocation2] sm:$0xff]
        %v340 = vld [vmem:[#allocation2 + $0x8] sm:$0xff]
        %v341 = vld [vmem:[#allocation2 + $0x10] sm:$0xff]
        %v342 = vld [vmem:[#allocation2 + $0x18] sm:$0xff]
        %v343 = vld [vmem:[#allocation2 + $0x20] sm:$0xff]
        %v344 = vld [vmem:[#allocation2 + $0x28] sm:$0xff]
        %v345 = vld [vmem:[#allocation2 + $0x30] sm:$0xff]
        %v346 = vld [vmem:[#allocation2 + $0x38] sm:$0xff]
        %v347 = vld [vmem:[#allocation2 + $0x40] sm:$0xff]
        %v348 = vld [vmem:[#allocation2 + $0x48] sm:$0xff]
        %v349 = vld [vmem:[#allocation2 + $0x50] sm:$0xff]
        %v350 = vld [vmem:[#allocation2 + $0x58] sm:$0xff]
        %v351 = vld [vmem:[#allocation2 + $0x60] sm:$0xff]
        %v352 = vld [vmem:[#allocation2 + $0x68] sm:$0xff]
        %v353 = vld [vmem:[#allocation2 + $0x70] sm:$0xff]
        %v354 = vld [vmem:[#allocation2 + $0x78] sm:$0xff]
        %v355 = vld [vmem:[#allocation2 + $0x80] sm:$0xff]
        %v356 = vld [vmem:[#allocation2 + $0x88] sm:$0xff]
        %v357 = vld [vmem:[#allocation2 + $0x90] sm:$0xff]
        %v358 = vld [vmem:[#allocation2 + $0x98] sm:$0xff]
        %v359 = vld [vmem:[#allocation2 + $0xa0] sm:$0xff]
        %v360 = vld [vmem:[#allocation2 + $0xa8] sm:$0xff]
        %v361 = vld [vmem:[#allocation2 + $0xb0] sm:$0xff]
        %v362 = vld [vmem:[#allocation2 + $0xb8] sm:$0xff]
        %v363 = vld [vmem:[#allocation2 + $0xc0] sm:$0xff]
        %v364 = vld [vmem:[#allocation2 + $0xc8] sm:$0xff]
        %v365 = vld [vmem:[#allocation2 + $0xd0] sm:$0xff]
        %v366 = vld [vmem:[#allocation2 + $0xd8] sm:$0xff]
        %v367 = vld [vmem:[#allocation2 + $0xe0] sm:$0xff]
        %v368 = vld [vmem:[#allocation2 + $0xe8] sm:$0xff]
        %v369 = vld [vmem:[#allocation2 + $0xf0] sm:$0xff]
        %v370 = vld [vmem:[#allocation2 + $0xf8] sm:$0xff]
        %v371 = vld [vmem:[%s3] sm:$0xff]
        %v372 = vld [vmem:[%s3 + $0x8] sm:$0xff]
        %v373 = vld [vmem:[%s3 + $0x10] sm:$0xff]
        %v374 = vld [vmem:[%s3 + $0x18] sm:$0xff]
        %v375 = vld [vmem:[%s3 + $0x20] sm:$0xff]
        %v376 = vld [vmem:[%s3 + $0x28] sm:$0xff]
        %v377 = vld [vmem:[%s3 + $0x30] sm:$0xff]
        %v378 = vld [vmem:[%s3 + $0x38] sm:$0xff]
        %v379 = vld [vmem:[%s3 + $0x40] sm:$0xff]
        %v380 = vld [vmem:[%s3 + $0x48] sm:$0xff]
        %v381 = vld [vmem:[%s3 + $0x50] sm:$0xff]
        %v382 = vld [vmem:[%s3 + $0x58] sm:$0xff]
        %v383 = vld [vmem:[%s3 + $0x60] sm:$0xff]
        %v384 = vld [vmem:[%s3 + $0x68] sm:$0xff]
        %v385 = vld [vmem:[%s3 + $0x70] sm:$0xff]
        %v386 = vld [vmem:[%s3 + $0x78] sm:$0xff]
        %v387 = vld [vmem:[%s3 + $0x80] sm:$0xff]
        %v388 = vld [vmem:[%s3 + $0x88] sm:$0xff]
        %v389 = vld [vmem:[%s3 + $0x90] sm:$0xff]
        %v390 = vld [vmem:[%s3 + $0x98] sm:$0xff]
        %v391 = vld [vmem:[%s3 + $0xa0] sm:$0xff]
        %v392 = vld [vmem:[%s3 + $0xa8] sm:$0xff]
        %v393 = vld [vmem:[%s3 + $0xb0] sm:$0xff]
        %v394 = vld [vmem:[%s3 + $0xb8] sm:$0xff]
        %v395 = vld [vmem:[%s3 + $0xc0] sm:$0xff]
        %v396 = vld [vmem:[%s3 + $0xc8] sm:$0xff]
        %v397 = vld [vmem:[%s3 + $0xd0] sm:$0xff]
        %v398 = vld [vmem:[%s3 + $0xd8] sm:$0xff]
        %v399 = vld [vmem:[%s3 + $0xe0] sm:$0xff]
        %v400 = vld [vmem:[%s3 + $0xe8] sm:$0xff]
        %v401 = vld [vmem:[%s3 + $0xf0] sm:$0xff]
        %v402 = vld [vmem:[%s3 + $0xf8] sm:$0xff]
        %v403 = vld [vmem:[%s3 + $0x100] sm:$0xff]
        %v404 = vld [vmem:[%s3 + $0x108] sm:$0xff]
        %v405 = vld [vmem:[%s3 + $0x110] sm:$0xff]
        %v406 = vld [vmem:[%s3 + $0x118] sm:$0xff]
        %v407 = vld [vmem:[%s3 + $0x120] sm:$0xff]
        %v408 = vld [vmem:[%s3 + $0x128] sm:$0xff]
        %v409 = vld [vmem:[%s3 + $0x130] sm:$0xff]
        %v410 = vld [vmem:[%s3 + $0x138] sm:$0xff]
        %v411 = vld [vmem:[%s3 + $0x140] sm:$0xff]
        %v412 = vld [vmem:[%s3 + $0x148] sm:$0xff]
        %v413 = vld [vmem:[%s3 + $0x150] sm:$0xff]
        %v414 = vld [vmem:[%s3 + $0x158] sm:$0xff]
        %v415 = vld [vmem:[%s3 + $0x160] sm:$0xff]
        %v416 = vld [vmem:[%s3 + $0x168] sm:$0xff]
        %v417 = vld [vmem:[%s3 + $0x170] sm:$0xff]
        %v418 = vld [vmem:[%s3 + $0x178] sm:$0xff]
        %v419 = vld [vmem:[%s3 + $0x180] sm:$0xff]
        %v420 = vld [vmem:[%s3 + $0x188] sm:$0xff]
        %v421 = vld [vmem:[%s3 + $0x190] sm:$0xff]
        %v422 = vld [vmem:[%s3 + $0x198] sm:$0xff]
        %v423 = vld [vmem:[%s3 + $0x1a0] sm:$0xff]
        %v424 = vld [vmem:[%s3 + $0x1a8] sm:$0xff]
        %v425 = vld [vmem:[%s3 + $0x1b0] sm:$0xff]
        %v426 = vld [vmem:[%s3 + $0x1b8] sm:$0xff]
        %v427 = vld [vmem:[%s3 + $0x1c0] sm:$0xff]
        %v428 = vld [vmem:[%s3 + $0x1c8] sm:$0xff]
        %v429 = vld [vmem:[%s3 + $0x1d0] sm:$0xff]
        %v430 = vld [vmem:[%s3 + $0x1d8] sm:$0xff]
        %v431 = vld [vmem:[%s3 + $0x1e0] sm:$0xff]
        %v432 = vld [vmem:[%s3 + $0x1e8] sm:$0xff]
        %v433 = vld [vmem:[%s3 + $0x1f0] sm:$0xff]
        %v434 = vld [vmem:[%s3 + $0x1f8] sm:$0xff]
        %v435 = vld [vmem:[#allocation5] sm:$0xff]
        %v436 = vld [vmem:[#allocation5 + $0x8] sm:$0xff]
        %v437 = vld [vmem:[#allocation5 + $0x10] sm:$0xff]
        %v438 = vld [vmem:[#allocation5 + $0x18] sm:$0xff]
        %v439 = vld [vmem:[#allocation5 + $0x20] sm:$0xff]
        %v440 = vld [vmem:[#allocation5 + $0x28] sm:$0xff]
        %v441 = vld [vmem:[#allocation5 + $0x30] sm:$0xff]
        %v442 = vld [vmem:[#allocation5 + $0x38] sm:$0xff]
        %v443 = vld [vmem:[#allocation5 + $0x40] sm:$0xff]
        %v444 = vld [vmem:[#allocation5 + $0x48] sm:$0xff]
        %v445 = vld [vmem:[#allocation5 + $0x50] sm:$0xff]
        %v446 = vld [vmem:[#allocation5 + $0x58] sm:$0xff]
        %v447 = vld [vmem:[#allocation5 + $0x60] sm:$0xff]
        %v448 = vld [vmem:[#allocation5 + $0x68] sm:$0xff]
        %v449 = vld [vmem:[#allocation5 + $0x70] sm:$0xff]
        %v450 = vld [vmem:[#allocation5 + $0x78] sm:$0xff]
        %v451 = vld [vmem:[#allocation5 + $0x80] sm:$0xff]
        %v452 = vld [vmem:[#allocation5 + $0x88] sm:$0xff]
        %v453 = vld [vmem:[#allocation5 + $0x90] sm:$0xff]
        %v454 = vld [vmem:[#allocation5 + $0x98] sm:$0xff]
        %v455 = vld [vmem:[#allocation5 + $0xa0] sm:$0xff]
        %v456 = vld [vmem:[#allocation5 + $0xa8] sm:$0xff]
        %v457 = vld [vmem:[#allocation5 + $0xb0] sm:$0xff]
        %v458 = vld [vmem:[#allocation5 + $0xb8] sm:$0xff]
        %v459 = vld [vmem:[#allocation5 + $0xc0] sm:$0xff]
        %v460 = vld [vmem:[#allocation5 + $0xc8] sm:$0xff]
        %v461 = vld [vmem:[#allocation5 + $0xd0] sm:$0xff]
        %v462 = vld [vmem:[#allocation5 + $0xd8] sm:$0xff]
        %v463 = vld [vmem:[#allocation5 + $0xe0] sm:$0xff]
        %v464 = vld [vmem:[#allocation5 + $0xe8] sm:$0xff]
        %v465 = vld [vmem:[#allocation5 + $0xf0] sm:$0xff]
        %v466 = vld [vmem:[#allocation5 + $0xf8] sm:$0xff]
        %v467 = vld [vmem:[%s2] sm:$0xf]
        %v468 = vld [vmem:[%s4] sm:$0x3]
        %v469 = vld [vmem:[%s6] sm:$0x3]
        %v470 = vld [vmem:[%s327] sm:$0xf]
        %v471 = vld [vmem:[%s327 + $0x4] sm:$0xf]
        %v472 = vld [vmem:[%s327 + $0x8] sm:$0xf]
        %v473 = vld [vmem:[%s327 + $0xc] sm:$0xf]
        %v475 = vperm.slane %v467, 0
        %v476 = vperm.slane %v467, 1
        %v477 = vperm.slane %v467, 2
        %v478 = vperm.slane %v467, 3
        %v487 = vunpack.c.l.b16 %v470
        %v488 = vunpack.c.l.b16 %v471
        %v489 = vunpack.c.l.b16 %v472
        %v490 = vunpack.c.l.b16 %v473
        %v491 = vpack.c.b16 %v488, %v487
        %v492 = vpack.c.b16 %v490, %v489
        %v527 = vunpack.c.l.b16 %v339
        %v528 = vunpack.c.h.b16 %v339
        %v529 = vunpack.c.l.b16 %v340
        %v530 = vunpack.c.h.b16 %v340
        %v531 = vunpack.c.l.b16 %v341
        %v532 = vunpack.c.h.b16 %v341
        %v533 = vunpack.c.l.b16 %v342
        %v534 = vunpack.c.h.b16 %v342
        %v535 = vunpack.c.l.b16 %v343
        %v536 = vunpack.c.h.b16 %v343
        %v537 = vunpack.c.l.b16 %v344
        %v538 = vunpack.c.h.b16 %v344
        %v539 = vunpack.c.l.b16 %v345
        %v540 = vunpack.c.h.b16 %v345
        %v541 = vunpack.c.l.b16 %v346
        %v542 = vunpack.c.h.b16 %v346
        %v543 = vunpack.c.l.b16 %v347
        %v544 = vunpack.c.h.b16 %v347
        %v545 = vunpack.c.l.b16 %v348
        %v546 = vunpack.c.h.b16 %v348
        %v547 = vunpack.c.l.b16 %v349
        %v548 = vunpack.c.h.b16 %v349
        %v549 = vunpack.c.l.b16 %v350
        %v550 = vunpack.c.h.b16 %v350
        %v551 = vunpack.c.l.b16 %v351
        %v552 = vunpack.c.h.b16 %v351
        %v553 = vunpack.c.l.b16 %v352
        %v554 = vunpack.c.h.b16 %v352
        %v555 = vunpack.c.l.b16 %v353
        %v556 = vunpack.c.h.b16 %v353
        %v557 = vunpack.c.l.b16 %v354
        %v558 = vunpack.c.h.b16 %v354
        %v559 = vunpack.c.l.b16 %v355
        %v560 = vunpack.c.h.b16 %v355
        %v561 = vunpack.c.l.b16 %v356
        %v562 = vunpack.c.h.b16 %v356
        %v563 = vunpack.c.l.b16 %v357
        %v564 = vunpack.c.h.b16 %v357
        %v565 = vunpack.c.l.b16 %v358
        %v566 = vunpack.c.h.b16 %v358
        %v567 = vunpack.c.l.b16 %v359
        %v568 = vunpack.c.h.b16 %v359
        %v569 = vunpack.c.l.b16 %v360
        %v570 = vunpack.c.h.b16 %v360
        %v571 = vunpack.c.l.b16 %v361
        %v572 = vunpack.c.h.b16 %v361
        %v573 = vunpack.c.l.b16 %v362
        %v574 = vunpack.c.h.b16 %v362
        %v575 = vunpack.c.l.b16 %v363
        %v576 = vunpack.c.h.b16 %v363
        %v577 = vunpack.c.l.b16 %v364
        %v578 = vunpack.c.h.b16 %v364
        %v579 = vunpack.c.l.b16 %v365
        %v580 = vunpack.c.h.b16 %v365
        %v581 = vunpack.c.l.b16 %v366
        %v582 = vunpack.c.h.b16 %v366
        %v583 = vunpack.c.l.b16 %v367
        %v584 = vunpack.c.h.b16 %v367
        %v585 = vunpack.c.l.b16 %v368
        %v586 = vunpack.c.h.b16 %v368
        %v587 = vunpack.c.l.b16 %v369
        %v588 = vunpack.c.h.b16 %v369
        %v589 = vunpack.c.l.b16 %v370
        %v590 = vunpack.c.h.b16 %v370
        %v591 = vpack.c.b16 %v531, %v527
        %v592 = vpack.c.b16 %v532, %v528
        %v593 = vpack.c.b16 %v533, %v529
        %v594 = vpack.c.b16 %v534, %v530
        %v595 = vpack.c.b16 %v539, %v535
        %v596 = vpack.c.b16 %v540, %v536
        %v597 = vpack.c.b16 %v541, %v537
        %v598 = vpack.c.b16 %v542, %v538
        %v599 = vpack.c.b16 %v547, %v543
        %v600 = vpack.c.b16 %v548, %v544
        %v601 = vpack.c.b16 %v549, %v545
        %v602 = vpack.c.b16 %v550, %v546
        %v603 = vpack.c.b16 %v555, %v551
        %v604 = vpack.c.b16 %v556, %v552
        %v605 = vpack.c.b16 %v557, %v553
        %v606 = vpack.c.b16 %v558, %v554
        %v607 = vpack.c.b16 %v563, %v559
        %v608 = vpack.c.b16 %v564, %v560
        %v609 = vpack.c.b16 %v565, %v561
        %v610 = vpack.c.b16 %v566, %v562
        %v611 = vpack.c.b16 %v571, %v567
        %v612 = vpack.c.b16 %v572, %v568
        %v613 = vpack.c.b16 %v573, %v569
        %v614 = vpack.c.b16 %v574, %v570
        %v615 = vpack.c.b16 %v579, %v575
        %v616 = vpack.c.b16 %v580, %v576
        %v617 = vpack.c.b16 %v581, %v577
        %v618 = vpack.c.b16 %v582, %v578
        %v619 = vpack.c.b16 %v587, %v583
        %v620 = vpack.c.b16 %v588, %v584
        %v621 = vpack.c.b16 %v589, %v585
        %v622 = vpack.c.b16 %v590, %v586
        %655 = vmatpush.bf16.msra.mxu0 %v619
        %656 = vmatpush.bf16.msra.mxu0 %v615
        %657 = vmatpush.bf16.msra.mxu0 %v611
        %658 = vmatpush.bf16.msra.mxu0 %v607
        %659 = vmatpush.bf16.msra.mxu0 %v603
        %660 = vmatpush.bf16.msra.mxu0 %v599
        %661 = vmatpush.bf16.msra.mxu0 %v595
        %662 = vmatpush.bf16.msra.mxu0 %v591
        %663 = vmatmul.bf16.gmra.mxu0 %v491
        %v664 = vpop.f32.mrf.mxu0
        %v665 = vadd.f32 %v475, %v664
        %v666 = vpop.f32.mrf.mxu0
        %v667 = vadd.f32 %v475, %v666
        %668 = vmatmul.bf16.gmra.mxu0 %v492
        %v669 = vpop.f32.mrf.mxu0
        %v670 = vadd.f32 %v475, %v669
        %v671 = vpop.f32.mrf.mxu0
        %v672 = vadd.f32 %v475, %v671
        %673 = vdwg.mxu0
        %674 = vmatpush.bf16.msra.mxu0 %v620
        %675 = vmatpush.bf16.msra.mxu0 %v616
        %676 = vmatpush.bf16.msra.mxu0 %v612
        %677 = vmatpush.bf16.msra.mxu0 %v608
        %678 = vmatpush.bf16.msra.mxu0 %v604
        %679 = vmatpush.bf16.msra.mxu0 %v600
        %680 = vmatpush.bf16.msra.mxu0 %v596
        %681 = vmatpush.bf16.msra.mxu0 %v592
        %682 = vmatmul.bf16.gmra.mxu0 %v491
        %v683 = vpop.f32.mrf.mxu0
        %v684 = vadd.f32 %v476, %v683
        %v685 = vpop.f32.mrf.mxu0
        %v686 = vadd.f32 %v476, %v685
        %687 = vmatmul.bf16.gmra.mxu0 %v492
        %v688 = vpop.f32.mrf.mxu0
        %v689 = vadd.f32 %v476, %v688
        %v690 = vpop.f32.mrf.mxu0
        %v691 = vadd.f32 %v476, %v690
        %692 = vdwg.mxu0
        %693 = vmatpush.bf16.msra.mxu0 %v621
        %694 = vmatpush.bf16.msra.mxu0 %v617
        %695 = vmatpush.bf16.msra.mxu0 %v613
        %696 = vmatpush.bf16.msra.mxu0 %v609
        %697 = vmatpush.bf16.msra.mxu0 %v605
        %698 = vmatpush.bf16.msra.mxu0 %v601
        %699 = vmatpush.bf16.msra.mxu0 %v597
        %700 = vmatpush.bf16.msra.mxu0 %v593
        %701 = vmatmul.bf16.gmra.mxu0 %v491
        %v702 = vpop.f32.mrf.mxu0
        %v703 = vadd.f32 %v477, %v702
        %v704 = vpop.f32.mrf.mxu0
        %v705 = vadd.f32 %v477, %v704
        %706 = vmatmul.bf16.gmra.mxu0 %v492
        %v707 = vpop.f32.mrf.mxu0
        %v708 = vadd.f32 %v477, %v707
        %v709 = vpop.f32.mrf.mxu0
        %v710 = vadd.f32 %v477, %v709
        %711 = vdwg.mxu0
        %712 = vmatpush.bf16.msra.mxu0 %v622
        %713 = vmatpush.bf16.msra.mxu0 %v618
        %714 = vmatpush.bf16.msra.mxu0 %v614
        %715 = vmatpush.bf16.msra.mxu0 %v610
        %716 = vmatpush.bf16.msra.mxu0 %v606
        %717 = vmatpush.bf16.msra.mxu0 %v602
        %718 = vmatpush.bf16.msra.mxu0 %v598
        %719 = vmatpush.bf16.msra.mxu0 %v594
        %720 = vmatmul.bf16.gmra.mxu0 %v491
        %v721 = vpop.f32.mrf.mxu0
        %v722 = vadd.f32 %v478, %v721
        %v723 = vpop.f32.mrf.mxu0
        %v724 = vadd.f32 %v478, %v723
        %725 = vmatmul.bf16.gmra.mxu0 %v492
        %v726 = vpop.f32.mrf.mxu0
        %v727 = vadd.f32 %v478, %v726
        %v728 = vpop.f32.mrf.mxu0
        %v729 = vadd.f32 %v478, %v728
        %730 = vdwg.mxu0
        %v731 = vtanh.pop %v665
        %v732 = vtanh.pop %v684
        %v733 = vtanh.pop %v703
        %v734 = vtanh.pop %v722
        %v735 = vtanh.pop %v667
        %v736 = vtanh.pop %v686
        %v737 = vtanh.pop %v705
        %v738 = vtanh.pop %v724
        %v739 = vtanh.pop %v670
        %v740 = vtanh.pop %v689
        %v741 = vtanh.pop %v708
        %v742 = vtanh.pop %v727
        %v743 = vtanh.pop %v672
        %v744 = vtanh.pop %v691
        %v745 = vtanh.pop %v710
        %v746 = vtanh.pop %v729
        %v747 = vpack.c.bf16 %v735, %v731
        %v748 = vpack.c.bf16 %v736, %v732
        %v749 = vpack.c.bf16 %v737, %v733
        %v750 = vpack.c.bf16 %v738, %v734
        %v751 = vpack.c.bf16 %v743, %v739
        %v752 = vpack.c.bf16 %v744, %v740
        %v753 = vpack.c.bf16 %v745, %v741
        %v754 = vpack.c.bf16 %v746, %v742
        %v756 = vperm.slane %v468, 0
        %v757 = vperm.slane %v468, 1
        %v824 = vunpack.c.l.b16 %v371
        %v825 = vunpack.c.h.b16 %v371
        %v826 = vunpack.c.l.b16 %v372
        %v827 = vunpack.c.h.b16 %v372
        %v828 = vunpack.c.l.b16 %v373
        %v829 = vunpack.c.h.b16 %v373
        %v830 = vunpack.c.l.b16 %v374
        %v831 = vunpack.c.h.b16 %v374
        %v832 = vunpack.c.l.b16 %v375
        %v833 = vunpack.c.h.b16 %v375
        %v834 = vunpack.c.l.b16 %v376
        %v835 = vunpack.c.h.b16 %v376
        %v836 = vunpack.c.l.b16 %v377
        %v837 = vunpack.c.h.b16 %v377
        %v838 = vunpack.c.l.b16 %v378
        %v839 = vunpack.c.h.b16 %v378
        %v840 = vunpack.c.l.b16 %v379
        %v841 = vunpack.c.h.b16 %v379
        %v842 = vunpack.c.l.b16 %v380
        %v843 = vunpack.c.h.b16 %v380
        %v844 = vunpack.c.l.b16 %v381
        %v845 = vunpack.c.h.b16 %v381
        %v846 = vunpack.c.l.b16 %v382
        %v847 = vunpack.c.h.b16 %v382
        %v848 = vunpack.c.l.b16 %v383
        %v849 = vunpack.c.h.b16 %v383
        %v850 = vunpack.c.l.b16 %v384
        %v851 = vunpack.c.h.b16 %v384
        %v852 = vunpack.c.l.b16 %v385
        %v853 = vunpack.c.h.b16 %v385
        %v854 = vunpack.c.l.b16 %v386
        %v855 = vunpack.c.h.b16 %v386
        %v856 = vunpack.c.l.b16 %v387
        %v857 = vunpack.c.h.b16 %v387
        %v858 = vunpack.c.l.b16 %v388
        %v859 = vunpack.c.h.b16 %v388
        %v860 = vunpack.c.l.b16 %v389
        %v861 = vunpack.c.h.b16 %v389
        %v862 = vunpack.c.l.b16 %v390
        %v863 = vunpack.c.h.b16 %v390
        %v864 = vunpack.c.l.b16 %v391
        %v865 = vunpack.c.h.b16 %v391
        %v866 = vunpack.c.l.b16 %v392
        %v867 = vunpack.c.h.b16 %v392
        %v868 = vunpack.c.l.b16 %v393
        %v869 = vunpack.c.h.b16 %v393
        %v870 = vunpack.c.l.b16 %v394
        %v871 = vunpack.c.h.b16 %v394
        %v872 = vunpack.c.l.b16 %v395
        %v873 = vunpack.c.h.b16 %v395
        %v874 = vunpack.c.l.b16 %v396
        %v875 = vunpack.c.h.b16 %v396
        %v876 = vunpack.c.l.b16 %v397
        %v877 = vunpack.c.h.b16 %v397
        %v878 = vunpack.c.l.b16 %v398
        %v879 = vunpack.c.h.b16 %v398
        %v880 = vunpack.c.l.b16 %v399
        %v881 = vunpack.c.h.b16 %v399
        %v882 = vunpack.c.l.b16 %v400
        %v883 = vunpack.c.h.b16 %v400
        %v884 = vunpack.c.l.b16 %v401
        %v885 = vunpack.c.h.b16 %v401
        %v886 = vunpack.c.l.b16 %v402
        %v887 = vunpack.c.h.b16 %v402
        %v888 = vunpack.c.l.b16 %v403
        %v889 = vunpack.c.h.b16 %v403
        %v890 = vunpack.c.l.b16 %v404
        %v891 = vunpack.c.h.b16 %v404
        %v892 = vunpack.c.l.b16 %v405
        %v893 = vunpack.c.h.b16 %v405
        %v894 = vunpack.c.l.b16 %v406
        %v895 = vunpack.c.h.b16 %v406
        %v896 = vunpack.c.l.b16 %v407
        %v897 = vunpack.c.h.b16 %v407
        %v898 = vunpack.c.l.b16 %v408
        %v899 = vunpack.c.h.b16 %v408
        %v900 = vunpack.c.l.b16 %v409
        %v901 = vunpack.c.h.b16 %v409
        %v902 = vunpack.c.l.b16 %v410
        %v903 = vunpack.c.h.b16 %v410
        %v904 = vunpack.c.l.b16 %v411
        %v905 = vunpack.c.h.b16 %v411
        %v906 = vunpack.c.l.b16 %v412
        %v907 = vunpack.c.h.b16 %v412
        %v908 = vunpack.c.l.b16 %v413
        %v909 = vunpack.c.h.b16 %v413
        %v910 = vunpack.c.l.b16 %v414
        %v911 = vunpack.c.h.b16 %v414
        %v912 = vunpack.c.l.b16 %v415
        %v913 = vunpack.c.h.b16 %v415
        %v914 = vunpack.c.l.b16 %v416
        %v915 = vunpack.c.h.b16 %v416
        %v916 = vunpack.c.l.b16 %v417
        %v917 = vunpack.c.h.b16 %v417
        %v918 = vunpack.c.l.b16 %v418
        %v919 = vunpack.c.h.b16 %v418
        %v920 = vunpack.c.l.b16 %v419
        %v921 = vunpack.c.h.b16 %v419
        %v922 = vunpack.c.l.b16 %v420
        %v923 = vunpack.c.h.b16 %v420
        %v924 = vunpack.c.l.b16 %v421
        %v925 = vunpack.c.h.b16 %v421
        %v926 = vunpack.c.l.b16 %v422
        %v927 = vunpack.c.h.b16 %v422
        %v928 = vunpack.c.l.b16 %v423
        %v929 = vunpack.c.h.b16 %v423
        %v930 = vunpack.c.l.b16 %v424
        %v931 = vunpack.c.h.b16 %v424
        %v932 = vunpack.c.l.b16 %v425
        %v933 = vunpack.c.h.b16 %v425
        %v934 = vunpack.c.l.b16 %v426
        %v935 = vunpack.c.h.b16 %v426
        %v936 = vunpack.c.l.b16 %v427
        %v937 = vunpack.c.h.b16 %v427
        %v938 = vunpack.c.l.b16 %v428
        %v939 = vunpack.c.h.b16 %v428
        %v940 = vunpack.c.l.b16 %v429
        %v941 = vunpack.c.h.b16 %v429
        %v942 = vunpack.c.l.b16 %v430
        %v943 = vunpack.c.h.b16 %v430
        %v944 = vunpack.c.l.b16 %v431
        %v945 = vunpack.c.h.b16 %v431
        %v946 = vunpack.c.l.b16 %v432
        %v947 = vunpack.c.h.b16 %v432
        %v948 = vunpack.c.l.b16 %v433
        %v949 = vunpack.c.h.b16 %v433
        %v950 = vunpack.c.l.b16 %v434
        %v951 = vunpack.c.h.b16 %v434
        %v952 = vpack.c.b16 %v826, %v824
        %v953 = vpack.c.b16 %v827, %v825
        %v954 = vpack.c.b16 %v830, %v828
        %v955 = vpack.c.b16 %v831, %v829
        %v956 = vpack.c.b16 %v834, %v832
        %v957 = vpack.c.b16 %v835, %v833
        %v958 = vpack.c.b16 %v838, %v836
        %v959 = vpack.c.b16 %v839, %v837
        %v960 = vpack.c.b16 %v842, %v840
        %v961 = vpack.c.b16 %v843, %v841
        %v962 = vpack.c.b16 %v846, %v844
        %v963 = vpack.c.b16 %v847, %v845
        %v964 = vpack.c.b16 %v850, %v848
        %v965 = vpack.c.b16 %v851, %v849
        %v966 = vpack.c.b16 %v854, %v852
        %v967 = vpack.c.b16 %v855, %v853
        %v968 = vpack.c.b16 %v858, %v856
        %v969 = vpack.c.b16 %v859, %v857
        %v970 = vpack.c.b16 %v862, %v860
        %v971 = vpack.c.b16 %v863, %v861
        %v972 = vpack.c.b16 %v866, %v864
        %v973 = vpack.c.b16 %v867, %v865
        %v974 = vpack.c.b16 %v870, %v868
        %v975 = vpack.c.b16 %v871, %v869
        %v976 = vpack.c.b16 %v874, %v872
        %v977 = vpack.c.b16 %v875, %v873
        %v978 = vpack.c.b16 %v878, %v876
        %v979 = vpack.c.b16 %v879, %v877
        %v980 = vpack.c.b16 %v882, %v880
        %v981 = vpack.c.b16 %v883, %v881
        %v982 = vpack.c.b16 %v886, %v884
        %v983 = vpack.c.b16 %v887, %v885
        %v984 = vpack.c.b16 %v890, %v888
        %v985 = vpack.c.b16 %v891, %v889
        %v986 = vpack.c.b16 %v894, %v892
        %v987 = vpack.c.b16 %v895, %v893
        %v988 = vpack.c.b16 %v898, %v896
        %v989 = vpack.c.b16 %v899, %v897
        %v990 = vpack.c.b16 %v902, %v900
        %v991 = vpack.c.b16 %v903, %v901
        %v992 = vpack.c.b16 %v906, %v904
        %v993 = vpack.c.b16 %v907, %v905
        %v994 = vpack.c.b16 %v910, %v908
        %v995 = vpack.c.b16 %v911, %v909
        %v996 = vpack.c.b16 %v914, %v912
        %v997 = vpack.c.b16 %v915, %v913
        %v998 = vpack.c.b16 %v918, %v916
        %v999 = vpack.c.b16 %v919, %v917
        %v1000 = vpack.c.b16 %v922, %v920
        %v1001 = vpack.c.b16 %v923, %v921
        %v1002 = vpack.c.b16 %v926, %v924
        %v1003 = vpack.c.b16 %v927, %v925
        %v1004 = vpack.c.b16 %v930, %v928
        %v1005 = vpack.c.b16 %v931, %v929
        %v1006 = vpack.c.b16 %v934, %v932
        %v1007 = vpack.c.b16 %v935, %v933
        %v1008 = vpack.c.b16 %v938, %v936
        %v1009 = vpack.c.b16 %v939, %v937
        %v1010 = vpack.c.b16 %v942, %v940
        %v1011 = vpack.c.b16 %v943, %v941
        %v1012 = vpack.c.b16 %v946, %v944
        %v1013 = vpack.c.b16 %v947, %v945
        %v1014 = vpack.c.b16 %v950, %v948
        %v1015 = vpack.c.b16 %v951, %v949
        %1080 = vmatpush.bf16.msra.mxu0 %v966
        %1081 = vmatpush.bf16.msra.mxu0 %v964
        %1082 = vmatpush.bf16.msra.mxu0 %v962
        %1083 = vmatpush.bf16.msra.mxu0 %v960
        %1084 = vmatpush.bf16.msra.mxu0 %v958
        %1085 = vmatpush.bf16.msra.mxu0 %v956
        %1086 = vmatpush.bf16.msra.mxu0 %v954
        %1087 = vmatpush.bf16.msra.mxu0 %v952
        %1088 = vmatmul.bf16.gmra.mxu0 %v747
        %v1089 = vpop.f32.mrf.mxu0
        %v1090 = vadd.f32 %v756, %v1089
        %v1091 = vpop.f32.mrf.mxu0
        %v1092 = vadd.f32 %v756, %v1091
        %1093 = vmatmul.bf16.gmra.mxu0 %v751
        %v1094 = vpop.f32.mrf.mxu0
        %v1095 = vadd.f32 %v756, %v1094
        %v1096 = vpop.f32.mrf.mxu0
        %v1097 = vadd.f32 %v756, %v1096
        %1098 = vdwg.mxu0
        %1099 = vmatpush.bf16.msra.mxu0 %v982
        %1100 = vmatpush.bf16.msra.mxu0 %v980
        %1101 = vmatpush.bf16.msra.mxu0 %v978
        %1102 = vmatpush.bf16.msra.mxu0 %v976
        %1103 = vmatpush.bf16.msra.mxu0 %v974
        %1104 = vmatpush.bf16.msra.mxu0 %v972
        %1105 = vmatpush.bf16.msra.mxu0 %v970
        %1106 = vmatpush.bf16.msra.mxu0 %v968
        %1107 = vmatmul.bf16.gmra.mxu0 %v748
        %v1108 = vpop.f32.mrf.mxu0
        %v1109 = vadd.f32 %v1090, %v1108
        %v1110 = vpop.f32.mrf.mxu0
        %v1111 = vadd.f32 %v1092, %v1110
        %1112 = vmatmul.bf16.gmra.mxu0 %v752
        %v1113 = vpop.f32.mrf.mxu0
        %v1114 = vadd.f32 %v1095, %v1113
        %v1115 = vpop.f32.mrf.mxu0
        %v1116 = vadd.f32 %v1097, %v1115
        %1117 = vdwg.mxu0
        %1118 = vmatpush.bf16.msra.mxu0 %v998
        %1119 = vmatpush.bf16.msra.mxu0 %v996
        %1120 = vmatpush.bf16.msra.mxu0 %v994
        %1121 = vmatpush.bf16.msra.mxu0 %v992
        %1122 = vmatpush.bf16.msra.mxu0 %v990
        %1123 = vmatpush.bf16.msra.mxu0 %v988
        %1124 = vmatpush.bf16.msra.mxu0 %v986
        %1125 = vmatpush.bf16.msra.mxu0 %v984
        %1126 = vmatmul.bf16.gmra.mxu0 %v749
        %v1127 = vpop.f32.mrf.mxu0
        %v1128 = vadd.f32 %v1109, %v1127
        %v1129 = vpop.f32.mrf.mxu0
        %v1130 = vadd.f32 %v1111, %v1129
        %1131 = vmatmul.bf16.gmra.mxu0 %v753
        %v1132 = vpop.f32.mrf.mxu0
        %v1133 = vadd.f32 %v1114, %v1132
        %v1134 = vpop.f32.mrf.mxu0
        %v1135 = vadd.f32 %v1116, %v1134
        %1136 = vdwg.mxu0
        %1137 = vmatpush.bf16.msra.mxu0 %v1014
        %1138 = vmatpush.bf16.msra.mxu0 %v1012
        %1139 = vmatpush.bf16.msra.mxu0 %v1010
        %1140 = vmatpush.bf16.msra.mxu0 %v1008
        %1141 = vmatpush.bf16.msra.mxu0 %v1006
        %1142 = vmatpush.bf16.msra.mxu0 %v1004
        %1143 = vmatpush.bf16.msra.mxu0 %v1002
        %1144 = vmatpush.bf16.msra.mxu0 %v1000
        %1145 = vmatmul.bf16.gmra.mxu0 %v750
        %v1146 = vpop.f32.mrf.mxu0
        %v1147 = vadd.f32 %v1128, %v1146
        %v1148 = vpop.f32.mrf.mxu0
        %v1149 = vadd.f32 %v1130, %v1148
        %1150 = vmatmul.bf16.gmra.mxu0 %v754
        %v1151 = vpop.f32.mrf.mxu0
        %v1152 = vadd.f32 %v1133, %v1151
        %v1153 = vpop.f32.mrf.mxu0
        %v1154 = vadd.f32 %v1135, %v1153
        %1155 = vdwg.mxu0
        %1156 = vmatpush.bf16.msra.mxu0 %v967
        %1157 = vmatpush.bf16.msra.mxu0 %v965
        %1158 = vmatpush.bf16.msra.mxu0 %v963
        %1159 = vmatpush.bf16.msra.mxu0 %v961
        %1160 = vmatpush.bf16.msra.mxu0 %v959
        %1161 = vmatpush.bf16.msra.mxu0 %v957
        %1162 = vmatpush.bf16.msra.mxu0 %v955
        %1163 = vmatpush.bf16.msra.mxu0 %v953
        %1164 = vmatmul.bf16.gmra.mxu0 %v747
        %v1165 = vpop.f32.mrf.mxu0
        %v1166 = vadd.f32 %v757, %v1165
        %v1167 = vpop.f32.mrf.mxu0
        %v1168 = vadd.f32 %v757, %v1167
        %1169 = vmatmul.bf16.gmra.mxu0 %v751
        %v1170 = vpop.f32.mrf.mxu0
        %v1171 = vadd.f32 %v757, %v1170
        %v1172 = vpop.f32.mrf.mxu0
        %v1173 = vadd.f32 %v757, %v1172
        %1174 = vdwg.mxu0
        %1175 = vmatpush.bf16.msra.mxu0 %v983
        %1176 = vmatpush.bf16.msra.mxu0 %v981
        %1177 = vmatpush.bf16.msra.mxu0 %v979
        %1178 = vmatpush.bf16.msra.mxu0 %v977
        %1179 = vmatpush.bf16.msra.mxu0 %v975
        %1180 = vmatpush.bf16.msra.mxu0 %v973
        %1181 = vmatpush.bf16.msra.mxu0 %v971
        %1182 = vmatpush.bf16.msra.mxu0 %v969
        %1183 = vmatmul.bf16.gmra.mxu0 %v748
        %v1184 = vpop.f32.mrf.mxu0
        %v1185 = vadd.f32 %v1166, %v1184
        %v1186 = vpop.f32.mrf.mxu0
        %v1187 = vadd.f32 %v1168, %v1186
        %1188 = vmatmul.bf16.gmra.mxu0 %v752
        %v1189 = vpop.f32.mrf.mxu0
        %v1190 = vadd.f32 %v1171, %v1189
        %v1191 = vpop.f32.mrf.mxu0
        %v1192 = vadd.f32 %v1173, %v1191
        %1193 = vdwg.mxu0
        %1194 = vmatpush.bf16.msra.mxu0 %v999
        %1195 = vmatpush.bf16.msra.mxu0 %v997
        %1196 = vmatpush.bf16.msra.mxu0 %v995
        %1197 = vmatpush.bf16.msra.mxu0 %v993
        %1198 = vmatpush.bf16.msra.mxu0 %v991
        %1199 = vmatpush.bf16.msra.mxu0 %v989
        %1200 = vmatpush.bf16.msra.mxu0 %v987
        %1201 = vmatpush.bf16.msra.mxu0 %v985
        %1202 = vmatmul.bf16.gmra.mxu0 %v749
        %v1203 = vpop.f32.mrf.mxu0
        %v1204 = vadd.f32 %v1185, %v1203
        %v1205 = vpop.f32.mrf.mxu0
        %v1206 = vadd.f32 %v1187, %v1205
        %1207 = vmatmul.bf16.gmra.mxu0 %v753
        %v1208 = vpop.f32.mrf.mxu0
        %v1209 = vadd.f32 %v1190, %v1208
        %v1210 = vpop.f32.mrf.mxu0
        %v1211 = vadd.f32 %v1192, %v1210
        %1212 = vdwg.mxu0
        %1213 = vmatpush.bf16.msra.mxu0 %v1015
        %1214 = vmatpush.bf16.msra.mxu0 %v1013
        %1215 = vmatpush.bf16.msra.mxu0 %v1011
        %1216 = vmatpush.bf16.msra.mxu0 %v1009
        %1217 = vmatpush.bf16.msra.mxu0 %v1007
        %1218 = vmatpush.bf16.msra.mxu0 %v1005
        %1219 = vmatpush.bf16.msra.mxu0 %v1003
        %1220 = vmatpush.bf16.msra.mxu0 %v1001
        %1221 = vmatmul.bf16.gmra.mxu0 %v750
        %v1222 = vpop.f32.mrf.mxu0
        %v1223 = vadd.f32 %v1204, %v1222
        %v1224 = vpop.f32.mrf.mxu0
        %v1225 = vadd.f32 %v1206, %v1224
        %1226 = vmatmul.bf16.gmra.mxu0 %v754
        %v1227 = vpop.f32.mrf.mxu0
        %v1228 = vadd.f32 %v1209, %v1227
        %v1229 = vpop.f32.mrf.mxu0
        %v1230 = vadd.f32 %v1211, %v1229
        %1231 = vdwg.mxu0
        %v1232 = vtanh.pop %v1147
        %v1233 = vtanh.pop %v1223
        %v1234 = vtanh.pop %v1149
        %v1235 = vtanh.pop %v1225
        %v1236 = vtanh.pop %v1152
        %v1237 = vtanh.pop %v1228
        %v1238 = vtanh.pop %v1154
        %v1239 = vtanh.pop %v1230
        %v1240 = vpack.c.bf16 %v1234, %v1232
        %v1241 = vpack.c.bf16 %v1235, %v1233
        %v1242 = vpack.c.bf16 %v1238, %v1236
        %v1243 = vpack.c.bf16 %v1239, %v1237
        %v1245 = vperm.slane %v469, 0
        %v1246 = vperm.slane %v469, 1
        %v1281 = vunpack.c.l.b16 %v435
        %v1282 = vunpack.c.h.b16 %v435
        %v1283 = vunpack.c.l.b16 %v436
        %v1284 = vunpack.c.h.b16 %v436
        %v1285 = vunpack.c.l.b16 %v437
        %v1286 = vunpack.c.h.b16 %v437
        %v1287 = vunpack.c.l.b16 %v438
        %v1288 = vunpack.c.h.b16 %v438
        %v1289 = vunpack.c.l.b16 %v439
        %v1290 = vunpack.c.h.b16 %v439
        %v1291 = vunpack.c.l.b16 %v440
        %v1292 = vunpack.c.h.b16 %v440
        %v1293 = vunpack.c.l.b16 %v441
        %v1294 = vunpack.c.h.b16 %v441
        %v1295 = vunpack.c.l.b16 %v442
        %v1296 = vunpack.c.h.b16 %v442
        %v1297 = vunpack.c.l.b16 %v443
        %v1298 = vunpack.c.h.b16 %v443
        %v1299 = vunpack.c.l.b16 %v444
        %v1300 = vunpack.c.h.b16 %v444
        %v1301 = vunpack.c.l.b16 %v445
        %v1302 = vunpack.c.h.b16 %v445
        %v1303 = vunpack.c.l.b16 %v446
        %v1304 = vunpack.c.h.b16 %v446
        %v1305 = vunpack.c.l.b16 %v447
        %v1306 = vunpack.c.h.b16 %v447
        %v1307 = vunpack.c.l.b16 %v448
        %v1308 = vunpack.c.h.b16 %v448
        %v1309 = vunpack.c.l.b16 %v449
        %v1310 = vunpack.c.h.b16 %v449
        %v1311 = vunpack.c.l.b16 %v450
        %v1312 = vunpack.c.h.b16 %v450
        %v1313 = vunpack.c.l.b16 %v451
        %v1314 = vunpack.c.h.b16 %v451
        %v1315 = vunpack.c.l.b16 %v452
        %v1316 = vunpack.c.h.b16 %v452
        %v1317 = vunpack.c.l.b16 %v453
        %v1318 = vunpack.c.h.b16 %v453
        %v1319 = vunpack.c.l.b16 %v454
        %v1320 = vunpack.c.h.b16 %v454
        %v1321 = vunpack.c.l.b16 %v455
        %v1322 = vunpack.c.h.b16 %v455
        %v1323 = vunpack.c.l.b16 %v456
        %v1324 = vunpack.c.h.b16 %v456
        %v1325 = vunpack.c.l.b16 %v457
        %v1326 = vunpack.c.h.b16 %v457
        %v1327 = vunpack.c.l.b16 %v458
        %v1328 = vunpack.c.h.b16 %v458
        %v1329 = vunpack.c.l.b16 %v459
        %v1330 = vunpack.c.h.b16 %v459
        %v1331 = vunpack.c.l.b16 %v460
        %v1332 = vunpack.c.h.b16 %v460
        %v1333 = vunpack.c.l.b16 %v461
        %v1334 = vunpack.c.h.b16 %v461
        %v1335 = vunpack.c.l.b16 %v462
        %v1336 = vunpack.c.h.b16 %v462
        %v1337 = vunpack.c.l.b16 %v463
        %v1338 = vunpack.c.h.b16 %v463
        %v1339 = vunpack.c.l.b16 %v464
        %v1340 = vunpack.c.h.b16 %v464
        %v1341 = vunpack.c.l.b16 %v465
        %v1342 = vunpack.c.h.b16 %v465
        %v1343 = vunpack.c.l.b16 %v466
        %v1344 = vunpack.c.h.b16 %v466
        %v1345 = vpack.c.b16 %v1283, %v1281
        %v1346 = vpack.c.b16 %v1284, %v1282
        %v1347 = vpack.c.b16 %v1287, %v1285
        %v1348 = vpack.c.b16 %v1288, %v1286
        %v1349 = vpack.c.b16 %v1291, %v1289
        %v1350 = vpack.c.b16 %v1292, %v1290
        %v1351 = vpack.c.b16 %v1295, %v1293
        %v1352 = vpack.c.b16 %v1296, %v1294
        %v1353 = vpack.c.b16 %v1299, %v1297
        %v1354 = vpack.c.b16 %v1300, %v1298
        %v1355 = vpack.c.b16 %v1303, %v1301
        %v1356 = vpack.c.b16 %v1304, %v1302
        %v1357 = vpack.c.b16 %v1307, %v1305
        %v1358 = vpack.c.b16 %v1308, %v1306
        %v1359 = vpack.c.b16 %v1311, %v1309
        %v1360 = vpack.c.b16 %v1312, %v1310
        %v1361 = vpack.c.b16 %v1315, %v1313
        %v1362 = vpack.c.b16 %v1316, %v1314
        %v1363 = vpack.c.b16 %v1319, %v1317
        %v1364 = vpack.c.b16 %v1320, %v1318
        %v1365 = vpack.c.b16 %v1323, %v1321
        %v1366 = vpack.c.b16 %v1324, %v1322
        %v1367 = vpack.c.b16 %v1327, %v1325
        %v1368 = vpack.c.b16 %v1328, %v1326
        %v1369 = vpack.c.b16 %v1331, %v1329
        %v1370 = vpack.c.b16 %v1332, %v1330
        %v1371 = vpack.c.b16 %v1335, %v1333
        %v1372 = vpack.c.b16 %v1336, %v1334
        %v1373 = vpack.c.b16 %v1339, %v1337
        %v1374 = vpack.c.b16 %v1340, %v1338
        %v1375 = vpack.c.b16 %v1343, %v1341
        %v1376 = vpack.c.b16 %v1344, %v1342
        %1409 = vmatpush.bf16.msra.mxu0 %v1359
        %1410 = vmatpush.bf16.msra.mxu0 %v1357
        %1411 = vmatpush.bf16.msra.mxu0 %v1355
        %1412 = vmatpush.bf16.msra.mxu0 %v1353
        %1413 = vmatpush.bf16.msra.mxu0 %v1351
        %1414 = vmatpush.bf16.msra.mxu0 %v1349
        %1415 = vmatpush.bf16.msra.mxu0 %v1347
        %1416 = vmatpush.bf16.msra.mxu0 %v1345
        %1417 = vmatmul.bf16.gmra.mxu0 %v1240
        %v1418 = vpop.f32.mrf.mxu0
        %v1419 = vadd.f32 %v1245, %v1418
        %v1420 = vpop.f32.mrf.mxu0
        %v1421 = vadd.f32 %v1245, %v1420
        %1422 = vmatmul.bf16.gmra.mxu0 %v1242
        %v1423 = vpop.f32.mrf.mxu0
        %v1424 = vadd.f32 %v1245, %v1423
        %v1425 = vpop.f32.mrf.mxu0
        %v1426 = vadd.f32 %v1245, %v1425
        %1427 = vdwg.mxu0
        %1428 = vmatpush.bf16.msra.mxu0 %v1375
        %1429 = vmatpush.bf16.msra.mxu0 %v1373
        %1430 = vmatpush.bf16.msra.mxu0 %v1371
        %1431 = vmatpush.bf16.msra.mxu0 %v1369
        %1432 = vmatpush.bf16.msra.mxu0 %v1367
        %1433 = vmatpush.bf16.msra.mxu0 %v1365
        %1434 = vmatpush.bf16.msra.mxu0 %v1363
        %1435 = vmatpush.bf16.msra.mxu0 %v1361
        %1436 = vmatmul.bf16.gmra.mxu0 %v1241
        %v1437 = vpop.f32.mrf.mxu0
        %v1438 = vadd.f32 %v1419, %v1437
        %v1439 = vpop.f32.mrf.mxu0
        %v1440 = vadd.f32 %v1421, %v1439
        %1441 = vmatmul.bf16.gmra.mxu0 %v1243
        %v1442 = vpop.f32.mrf.mxu0
        %v1443 = vadd.f32 %v1424, %v1442
        %v1444 = vpop.f32.mrf.mxu0
        %v1445 = vadd.f32 %v1426, %v1444
        %1446 = vdwg.mxu0
        %1447 = vmatpush.bf16.msra.mxu0 %v1360
        %1448 = vmatpush.bf16.msra.mxu0 %v1358
        %1449 = vmatpush.bf16.msra.mxu0 %v1356
        %1450 = vmatpush.bf16.msra.mxu0 %v1354
        %1451 = vmatpush.bf16.msra.mxu0 %v1352
        %1452 = vmatpush.bf16.msra.mxu0 %v1350
        %1453 = vmatpush.bf16.msra.mxu0 %v1348
        %1454 = vmatpush.bf16.msra.mxu0 %v1346
        %1455 = vmatmul.bf16.gmra.mxu0 %v1240
        %v1456 = vpop.f32.mrf.mxu0
        %v1457 = vadd.f32 %v1246, %v1456
        %v1458 = vpop.f32.mrf.mxu0
        %v1459 = vadd.f32 %v1246, %v1458
        %1460 = vmatmul.bf16.gmra.mxu0 %v1242
        %v1461 = vpop.f32.mrf.mxu0
        %v1462 = vadd.f32 %v1246, %v1461
        %v1463 = vpop.f32.mrf.mxu0
        %v1464 = vadd.f32 %v1246, %v1463
        %1465 = vdwg.mxu0
        %1466 = vmatpush.bf16.msra.mxu0 %v1376
        %1467 = vmatpush.bf16.msra.mxu0 %v1374
        %1468 = vmatpush.bf16.msra.mxu0 %v1372
        %1469 = vmatpush.bf16.msra.mxu0 %v1370
        %1470 = vmatpush.bf16.msra.mxu0 %v1368
        %1471 = vmatpush.bf16.msra.mxu0 %v1366
        %1472 = vmatpush.bf16.msra.mxu0 %v1364
        %1473 = vmatpush.bf16.msra.mxu0 %v1362
        %1474 = vmatmul.bf16.gmra.mxu0 %v1241
        %v1475 = vpop.f32.mrf.mxu0
        %v1476 = vadd.f32 %v1457, %v1475
        %v1477 = vpop.f32.mrf.mxu0
        %v1478 = vadd.f32 %v1459, %v1477
        %1479 = vmatmul.bf16.gmra.mxu0 %v1243
        %v1480 = vpop.f32.mrf.mxu0
        %v1481 = vadd.f32 %v1462, %v1480
        %v1482 = vpop.f32.mrf.mxu0
        %v1483 = vadd.f32 %v1464, %v1482
        %1484 = vdwg.mxu0
        %v1485 = vtanh.pop %v1438
        %v1486 = vtanh.pop %v1476
        %v1487 = vtanh.pop %v1440
        %v1488 = vtanh.pop %v1478
        %v1489 = vtanh.pop %v1443
        %v1490 = vtanh.pop %v1481
        %v1491 = vtanh.pop %v1445
        %v1492 = vtanh.pop %v1483
        %1493 = vst [vmem:[%s318] sm:$0xff] %v1485
        %1494 = vst [vmem:[%s318 + $0x8] sm:$0xff] %v1486
        %1495 = vst [vmem:[%s318 + $0x10] sm:$0xff] %v1487
        %1496 = vst [vmem:[%s318 + $0x18] sm:$0xff] %v1488
        %1497 = vst [vmem:[%s318 + $0x20] sm:$0xff] %v1489
        %1498 = vst [vmem:[%s318 + $0x28] sm:$0xff] %v1490
        %1499 = vst [vmem:[%s318 + $0x30] sm:$0xff] %v1491
        %1500 = vst [vmem:[%s318 + $0x38] sm:$0xff] %v1492
        %v1501 = vld [vmem:[%s327 + $0x10] sm:$0xf]
        %v1502 = vld [vmem:[%s327 + $0x14] sm:$0xf]
        %v1503 = vld [vmem:[%s327 + $0x18] sm:$0xf]
        %v1504 = vld [vmem:[%s327 + $0x1c] sm:$0xf]
        %v1509 = vunpack.c.l.b16 %v1501
        %v1510 = vunpack.c.l.b16 %v1502
        %v1511 = vunpack.c.l.b16 %v1503
        %v1512 = vunpack.c.l.b16 %v1504
        %v1513 = vpack.c.b16 %v1510, %v1509
        %v1514 = vpack.c.b16 %v1512, %v1511
        %1517 = vmatpush.bf16.msra.mxu0 %v619
        %1518 = vmatpush.bf16.msra.mxu0 %v615
        %1519 = vmatpush.bf16.msra.mxu0 %v611
        %1520 = vmatpush.bf16.msra.mxu0 %v607
        %1521 = vmatpush.bf16.msra.mxu0 %v603
        %1522 = vmatpush.bf16.msra.mxu0 %v599
        %1523 = vmatpush.bf16.msra.mxu0 %v595
        %1524 = vmatpush.bf16.msra.mxu0 %v591
        %1525 = vmatmul.bf16.gmra.mxu0 %v1513
        %v1526 = vpop.f32.mrf.mxu0
        %v1527 = vadd.f32 %v475, %v1526
        %v1528 = vpop.f32.mrf.mxu0
        %v1529 = vadd.f32 %v475, %v1528
        %1530 = vmatmul.bf16.gmra.mxu0 %v1514
        %v1531 = vpop.f32.mrf.mxu0
        %v1532 = vadd.f32 %v475, %v1531
        %v1533 = vpop.f32.mrf.mxu0
        %v1534 = vadd.f32 %v475, %v1533
        %1535 = vdwg.mxu0
        %1536 = vmatpush.bf16.msra.mxu0 %v620
        %1537 = vmatpush.bf16.msra.mxu0 %v616
        %1538 = vmatpush.bf16.msra.mxu0 %v612
        %1539 = vmatpush.bf16.msra.mxu0 %v608
        %1540 = vmatpush.bf16.msra.mxu0 %v604
        %1541 = vmatpush.bf16.msra.mxu0 %v600
        %1542 = vmatpush.bf16.msra.mxu0 %v596
        %1543 = vmatpush.bf16.msra.mxu0 %v592
        %1544 = vmatmul.bf16.gmra.mxu0 %v1513
        %v1545 = vpop.f32.mrf.mxu0
        %v1546 = vadd.f32 %v476, %v1545
        %v1547 = vpop.f32.mrf.mxu0
        %v1548 = vadd.f32 %v476, %v1547
        %1549 = vmatmul.bf16.gmra.mxu0 %v1514
        %v1550 = vpop.f32.mrf.mxu0
        %v1551 = vadd.f32 %v476, %v1550
        %v1552 = vpop.f32.mrf.mxu0
        %v1553 = vadd.f32 %v476, %v1552
        %1554 = vdwg.mxu0
        %1555 = vmatpush.bf16.msra.mxu0 %v621
        %1556 = vmatpush.bf16.msra.mxu0 %v617
        %1557 = vmatpush.bf16.msra.mxu0 %v613
        %1558 = vmatpush.bf16.msra.mxu0 %v609
        %1559 = vmatpush.bf16.msra.mxu0 %v605
        %1560 = vmatpush.bf16.msra.mxu0 %v601
        %1561 = vmatpush.bf16.msra.mxu0 %v597
        %1562 = vmatpush.bf16.msra.mxu0 %v593
        %1563 = vmatmul.bf16.gmra.mxu0 %v1513
        %v1564 = vpop.f32.mrf.mxu0
        %v1565 = vadd.f32 %v477, %v1564
        %v1566 = vpop.f32.mrf.mxu0
        %v1567 = vadd.f32 %v477, %v1566
        %1568 = vmatmul.bf16.gmra.mxu0 %v1514
        %v1569 = vpop.f32.mrf.mxu0
        %v1570 = vadd.f32 %v477, %v1569
        %v1571 = vpop.f32.mrf.mxu0
        %v1572 = vadd.f32 %v477, %v1571
        %1573 = vdwg.mxu0
        %1574 = vmatpush.bf16.msra.mxu0 %v622
        %1575 = vmatpush.bf16.msra.mxu0 %v618
        %1576 = vmatpush.bf16.msra.mxu0 %v614
        %1577 = vmatpush.bf16.msra.mxu0 %v610
        %1578 = vmatpush.bf16.msra.mxu0 %v606
        %1579 = vmatpush.bf16.msra.mxu0 %v602
        %1580 = vmatpush.bf16.msra.mxu0 %v598
        %1581 = vmatpush.bf16.msra.mxu0 %v594
        %1582 = vmatmul.bf16.gmra.mxu0 %v1513
        %v1583 = vpop.f32.mrf.mxu0
        %v1584 = vadd.f32 %v478, %v1583
        %v1585 = vpop.f32.mrf.mxu0
        %v1586 = vadd.f32 %v478, %v1585
        %1587 = vmatmul.bf16.gmra.mxu0 %v1514
        %v1588 = vpop.f32.mrf.mxu0
        %v1589 = vadd.f32 %v478, %v1588
        %v1590 = vpop.f32.mrf.mxu0
        %v1591 = vadd.f32 %v478, %v1590
        %1592 = vdwg.mxu0
        %v1593 = vtanh.pop %v1527
        %v1594 = vtanh.pop %v1546
        %v1595 = vtanh.pop %v1565
        %v1596 = vtanh.pop %v1584
        %v1597 = vtanh.pop %v1529
        %v1598 = vtanh.pop %v1548
        %v1599 = vtanh.pop %v1567
        %v1600 = vtanh.pop %v1586
        %v1601 = vtanh.pop %v1532
        %v1602 = vtanh.pop %v1551
        %v1603 = vtanh.pop %v1570
        %v1604 = vtanh.pop %v1589
        %v1605 = vtanh.pop %v1534
        %v1606 = vtanh.pop %v1553
        %v1607 = vtanh.pop %v1572
        %v1608 = vtanh.pop %v1591
        %v1609 = vpack.c.bf16 %v1597, %v1593
        %v1610 = vpack.c.bf16 %v1598, %v1594
        %v1611 = vpack.c.bf16 %v1599, %v1595
        %v1612 = vpack.c.bf16 %v1600, %v1596
        %v1613 = vpack.c.bf16 %v1605, %v1601
        %v1614 = vpack.c.bf16 %v1606, %v1602
        %v1615 = vpack.c.bf16 %v1607, %v1603
        %v1616 = vpack.c.bf16 %v1608, %v1604
        %1617 = vmatpush.bf16.msra.mxu0 %v966
        %1618 = vmatpush.bf16.msra.mxu0 %v964
        %1619 = vmatpush.bf16.msra.mxu0 %v962
        %1620 = vmatpush.bf16.msra.mxu0 %v960
        %1621 = vmatpush.bf16.msra.mxu0 %v958
        %1622 = vmatpush.bf16.msra.mxu0 %v956
        %1623 = vmatpush.bf16.msra.mxu0 %v954
        %1624 = vmatpush.bf16.msra.mxu0 %v952
        %1625 = vmatmul.bf16.gmra.mxu0 %v1609
        %v1626 = vpop.f32.mrf.mxu0
        %v1627 = vadd.f32 %v756, %v1626
        %v1628 = vpop.f32.mrf.mxu0
        %v1629 = vadd.f32 %v756, %v1628
        %1630 = vmatmul.bf16.gmra.mxu0 %v1613
        %v1631 = vpop.f32.mrf.mxu0
        %v1632 = vadd.f32 %v756, %v1631
        %v1633 = vpop.f32.mrf.mxu0
        %v1634 = vadd.f32 %v756, %v1633
        %1635 = vdwg.mxu0
        %1636 = vmatpush.bf16.msra.mxu0 %v982
        %1637 = vmatpush.bf16.msra.mxu0 %v980
        %1638 = vmatpush.bf16.msra.mxu0 %v978
        %1639 = vmatpush.bf16.msra.mxu0 %v976
        %1640 = vmatpush.bf16.msra.mxu0 %v974
        %1641 = vmatpush.bf16.msra.mxu0 %v972
        %1642 = vmatpush.bf16.msra.mxu0 %v970
        %1643 = vmatpush.bf16.msra.mxu0 %v968
        %1644 = vmatmul.bf16.gmra.mxu0 %v1610
        %v1645 = vpop.f32.mrf.mxu0
        %v1646 = vadd.f32 %v1627, %v1645
        %v1647 = vpop.f32.mrf.mxu0
        %v1648 = vadd.f32 %v1629, %v1647
        %1649 = vmatmul.bf16.gmra.mxu0 %v1614
        %v1650 = vpop.f32.mrf.mxu0
        %v1651 = vadd.f32 %v1632, %v1650
        %v1652 = vpop.f32.mrf.mxu0
        %v1653 = vadd.f32 %v1634, %v1652
        %1654 = vdwg.mxu0
        %1655 = vmatpush.bf16.msra.mxu0 %v998
        %1656 = vmatpush.bf16.msra.mxu0 %v996
        %1657 = vmatpush.bf16.msra.mxu0 %v994
        %1658 = vmatpush.bf16.msra.mxu0 %v992
        %1659 = vmatpush.bf16.msra.mxu0 %v990
        %1660 = vmatpush.bf16.msra.mxu0 %v988
        %1661 = vmatpush.bf16.msra.mxu0 %v986
        %1662 = vmatpush.bf16.msra.mxu0 %v984
        %1663 = vmatmul.bf16.gmra.mxu0 %v1611
        %v1664 = vpop.f32.mrf.mxu0
        %v1665 = vadd.f32 %v1646, %v1664
        %v1666 = vpop.f32.mrf.mxu0
        %v1667 = vadd.f32 %v1648, %v1666
        %1668 = vmatmul.bf16.gmra.mxu0 %v1615
        %v1669 = vpop.f32.mrf.mxu0
        %v1670 = vadd.f32 %v1651, %v1669
        %v1671 = vpop.f32.mrf.mxu0
        %v1672 = vadd.f32 %v1653, %v1671
        %1673 = vdwg.mxu0
        %1674 = vmatpush.bf16.msra.mxu0 %v1014
        %1675 = vmatpush.bf16.msra.mxu0 %v1012
        %1676 = vmatpush.bf16.msra.mxu0 %v1010
        %1677 = vmatpush.bf16.msra.mxu0 %v1008
        %1678 = vmatpush.bf16.msra.mxu0 %v1006
        %1679 = vmatpush.bf16.msra.mxu0 %v1004
        %1680 = vmatpush.bf16.msra.mxu0 %v1002
        %1681 = vmatpush.bf16.msra.mxu0 %v1000
        %1682 = vmatmul.bf16.gmra.mxu0 %v1612
        %v1683 = vpop.f32.mrf.mxu0
        %v1684 = vadd.f32 %v1665, %v1683
        %v1685 = vpop.f32.mrf.mxu0
        %v1686 = vadd.f32 %v1667, %v1685
        %1687 = vmatmul.bf16.gmra.mxu0 %v1616
        %v1688 = vpop.f32.mrf.mxu0
        %v1689 = vadd.f32 %v1670, %v1688
        %v1690 = vpop.f32.mrf.mxu0
        %v1691 = vadd.f32 %v1672, %v1690
        %1692 = vdwg.mxu0
        %1693 = vmatpush.bf16.msra.mxu0 %v967
        %1694 = vmatpush.bf16.msra.mxu0 %v965
        %1695 = vmatpush.bf16.msra.mxu0 %v963
        %1696 = vmatpush.bf16.msra.mxu0 %v961
        %1697 = vmatpush.bf16.msra.mxu0 %v959
        %1698 = vmatpush.bf16.msra.mxu0 %v957
        %1699 = vmatpush.bf16.msra.mxu0 %v955
        %1700 = vmatpush.bf16.msra.mxu0 %v953
        %1701 = vmatmul.bf16.gmra.mxu0 %v1609
        %v1702 = vpop.f32.mrf.mxu0
        %v1703 = vadd.f32 %v757, %v1702
        %v1704 = vpop.f32.mrf.mxu0
        %v1705 = vadd.f32 %v757, %v1704
        %1706 = vmatmul.bf16.gmra.mxu0 %v1613
        %v1707 = vpop.f32.mrf.mxu0
        %v1708 = vadd.f32 %v757, %v1707
        %v1709 = vpop.f32.mrf.mxu0
        %v1710 = vadd.f32 %v757, %v1709
        %1711 = vdwg.mxu0
        %1712 = vmatpush.bf16.msra.mxu0 %v983
        %1713 = vmatpush.bf16.msra.mxu0 %v981
        %1714 = vmatpush.bf16.msra.mxu0 %v979
        %1715 = vmatpush.bf16.msra.mxu0 %v977
        %1716 = vmatpush.bf16.msra.mxu0 %v975
        %1717 = vmatpush.bf16.msra.mxu0 %v973
        %1718 = vmatpush.bf16.msra.mxu0 %v971
        %1719 = vmatpush.bf16.msra.mxu0 %v969
        %1720 = vmatmul.bf16.gmra.mxu0 %v1610
        %v1721 = vpop.f32.mrf.mxu0
        %v1722 = vadd.f32 %v1703, %v1721
        %v1723 = vpop.f32.mrf.mxu0
        %v1724 = vadd.f32 %v1705, %v1723
        %1725 = vmatmul.bf16.gmra.mxu0 %v1614
        %v1726 = vpop.f32.mrf.mxu0
        %v1727 = vadd.f32 %v1708, %v1726
        %v1728 = vpop.f32.mrf.mxu0
        %v1729 = vadd.f32 %v1710, %v1728
        %1730 = vdwg.mxu0
        %1731 = vmatpush.bf16.msra.mxu0 %v999
        %1732 = vmatpush.bf16.msra.mxu0 %v997
        %1733 = vmatpush.bf16.msra.mxu0 %v995
        %1734 = vmatpush.bf16.msra.mxu0 %v993
        %1735 = vmatpush.bf16.msra.mxu0 %v991
        %1736 = vmatpush.bf16.msra.mxu0 %v989
        %1737 = vmatpush.bf16.msra.mxu0 %v987
        %1738 = vmatpush.bf16.msra.mxu0 %v985
        %1739 = vmatmul.bf16.gmra.mxu0 %v1611
        %v1740 = vpop.f32.mrf.mxu0
        %v1741 = vadd.f32 %v1722, %v1740
        %v1742 = vpop.f32.mrf.mxu0
        %v1743 = vadd.f32 %v1724, %v1742
        %1744 = vmatmul.bf16.gmra.mxu0 %v1615
        %v1745 = vpop.f32.mrf.mxu0
        %v1746 = vadd.f32 %v1727, %v1745
        %v1747 = vpop.f32.mrf.mxu0
        %v1748 = vadd.f32 %v1729, %v1747
        %1749 = vdwg.mxu0
        %1750 = vmatpush.bf16.msra.mxu0 %v1015
        %1751 = vmatpush.bf16.msra.mxu0 %v1013
        %1752 = vmatpush.bf16.msra.mxu0 %v1011
        %1753 = vmatpush.bf16.msra.mxu0 %v1009
        %1754 = vmatpush.bf16.msra.mxu0 %v1007
        %1755 = vmatpush.bf16.msra.mxu0 %v1005
        %1756 = vmatpush.bf16.msra.mxu0 %v1003
        %1757 = vmatpush.bf16.msra.mxu0 %v1001
        %1758 = vmatmul.bf16.gmra.mxu0 %v1612
        %v1759 = vpop.f32.mrf.mxu0
        %v1760 = vadd.f32 %v1741, %v1759
        %v1761 = vpop.f32.mrf.mxu0
        %v1762 = vadd.f32 %v1743, %v1761
        %1763 = vmatmul.bf16.gmra.mxu0 %v1616
        %v1764 = vpop.f32.mrf.mxu0
        %v1765 = vadd.f32 %v1746, %v1764
        %v1766 = vpop.f32.mrf.mxu0
        %v1767 = vadd.f32 %v1748, %v1766
        %1768 = vdwg.mxu0
        %v1769 = vtanh.pop %v1684
        %v1770 = vtanh.pop %v1760
        %v1771 = vtanh.pop %v1686
        %v1772 = vtanh.pop %v1762
        %v1773 = vtanh.pop %v1689
        %v1774 = vtanh.pop %v1765
        %v1775 = vtanh.pop %v1691
        %v1776 = vtanh.pop %v1767
        %v1777 = vpack.c.bf16 %v1771, %v1769
        %v1778 = vpack.c.bf16 %v1772, %v1770
        %v1779 = vpack.c.bf16 %v1775, %v1773
        %v1780 = vpack.c.bf16 %v1776, %v1774
        %1781 = vmatpush.bf16.msra.mxu0 %v1359
        %1782 = vmatpush.bf16.msra.mxu0 %v1357
        %1783 = vmatpush.bf16.msra.mxu0 %v1355
        %1784 = vmatpush.bf16.msra.mxu0 %v1353
        %1785 = vmatpush.bf16.msra.mxu0 %v1351
        %1786 = vmatpush.bf16.msra.mxu0 %v1349
        %1787 = vmatpush.bf16.msra.mxu0 %v1347
        %1788 = vmatpush.bf16.msra.mxu0 %v1345
        %1789 = vmatmul.bf16.gmra.mxu0 %v1777
        %v1790 = vpop.f32.mrf.mxu0
        %v1791 = vadd.f32 %v1245, %v1790
        %v1792 = vpop.f32.mrf.mxu0
        %v1793 = vadd.f32 %v1245, %v1792
        %1794 = vmatmul.bf16.gmra.mxu0 %v1779
        %v1795 = vpop.f32.mrf.mxu0
        %v1796 = vadd.f32 %v1245, %v1795
        %v1797 = vpop.f32.mrf.mxu0
        %v1798 = vadd.f32 %v1245, %v1797
        %1799 = vdwg.mxu0
        %1800 = vmatpush.bf16.msra.mxu0 %v1375
        %1801 = vmatpush.bf16.msra.mxu0 %v1373
        %1802 = vmatpush.bf16.msra.mxu0 %v1371
        %1803 = vmatpush.bf16.msra.mxu0 %v1369
        %1804 = vmatpush.bf16.msra.mxu0 %v1367
        %1805 = vmatpush.bf16.msra.mxu0 %v1365
        %1806 = vmatpush.bf16.msra.mxu0 %v1363
        %1807 = vmatpush.bf16.msra.mxu0 %v1361
        %1808 = vmatmul.bf16.gmra.mxu0 %v1778
        %v1809 = vpop.f32.mrf.mxu0
        %v1810 = vadd.f32 %v1791, %v1809
        %v1811 = vpop.f32.mrf.mxu0
        %v1812 = vadd.f32 %v1793, %v1811
        %1813 = vmatmul.bf16.gmra.mxu0 %v1780
        %v1814 = vpop.f32.mrf.mxu0
        %v1815 = vadd.f32 %v1796, %v1814
        %v1816 = vpop.f32.mrf.mxu0
        %v1817 = vadd.f32 %v1798, %v1816
        %1818 = vdwg.mxu0
        %1819 = vmatpush.bf16.msra.mxu0 %v1360
        %1820 = vmatpush.bf16.msra.mxu0 %v1358
        %1821 = vmatpush.bf16.msra.mxu0 %v1356
        %1822 = vmatpush.bf16.msra.mxu0 %v1354
        %1823 = vmatpush.bf16.msra.mxu0 %v1352
        %1824 = vmatpush.bf16.msra.mxu0 %v1350
        %1825 = vmatpush.bf16.msra.mxu0 %v1348
        %1826 = vmatpush.bf16.msra.mxu0 %v1346
        %1827 = vmatmul.bf16.gmra.mxu0 %v1777
        %v1828 = vpop.f32.mrf.mxu0
        %v1829 = vadd.f32 %v1246, %v1828
        %v1830 = vpop.f32.mrf.mxu0
        %v1831 = vadd.f32 %v1246, %v1830
        %1832 = vmatmul.bf16.gmra.mxu0 %v1779
        %v1833 = vpop.f32.mrf.mxu0
        %v1834 = vadd.f32 %v1246, %v1833
        %v1835 = vpop.f32.mrf.mxu0
        %v1836 = vadd.f32 %v1246, %v1835
        %1837 = vdwg.mxu0
        %1838 = vmatpush.bf16.msra.mxu0 %v1376
        %1839 = vmatpush.bf16.msra.mxu0 %v1374
        %1840 = vmatpush.bf16.msra.mxu0 %v1372
        %1841 = vmatpush.bf16.msra.mxu0 %v1370
        %1842 = vmatpush.bf16.msra.mxu0 %v1368
        %1843 = vmatpush.bf16.msra.mxu0 %v1366
        %1844 = vmatpush.bf16.msra.mxu0 %v1364
        %1845 = vmatpush.bf16.msra.mxu0 %v1362
        %1846 = vmatmul.bf16.gmra.mxu0 %v1778
        %v1847 = vpop.f32.mrf.mxu0
        %v1848 = vadd.f32 %v1829, %v1847
        %v1849 = vpop.f32.mrf.mxu0
        %v1850 = vadd.f32 %v1831, %v1849
        %1851 = vmatmul.bf16.gmra.mxu0 %v1780
        %v1852 = vpop.f32.mrf.mxu0
        %v1853 = vadd.f32 %v1834, %v1852
        %v1854 = vpop.f32.mrf.mxu0
        %v1855 = vadd.f32 %v1836, %v1854
        %1856 = vdwg.mxu0
        %v1857 = vtanh.pop %v1810
        %v1858 = vtanh.pop %v1848
        %v1859 = vtanh.pop %v1812
        %v1860 = vtanh.pop %v1850
        %v1861 = vtanh.pop %v1815
        %v1862 = vtanh.pop %v1853
        %v1863 = vtanh.pop %v1817
        %v1864 = vtanh.pop %v1855
        %1865 = vst [vmem:[%s318 + $0x40] sm:$0xff] %v1857
        %1866 = vst [vmem:[%s318 + $0x48] sm:$0xff] %v1858
        %1867 = vst [vmem:[%s318 + $0x50] sm:$0xff] %v1859
        %1868 = vst [vmem:[%s318 + $0x58] sm:$0xff] %v1860
        %1869 = vst [vmem:[%s318 + $0x60] sm:$0xff] %v1861
        %1870 = vst [vmem:[%s318 + $0x68] sm:$0xff] %v1862
        %1871 = vst [vmem:[%s318 + $0x70] sm:$0xff] %v1863
        %1872 = vst [vmem:[%s318 + $0x78] sm:$0xff] %v1864
        %v1873 = vld [vmem:[%s327 + $0x20] sm:$0xf]
        %v1874 = vld [vmem:[%s327 + $0x24] sm:$0xf]
        %v1875 = vld [vmem:[%s327 + $0x28] sm:$0xf]
        %v1876 = vld [vmem:[%s327 + $0x2c] sm:$0xf]
        %v1881 = vunpack.c.l.b16 %v1873
        %v1882 = vunpack.c.l.b16 %v1874
        %v1883 = vunpack.c.l.b16 %v1875
        %v1884 = vunpack.c.l.b16 %v1876
        %v1885 = vpack.c.b16 %v1882, %v1881
        %v1886 = vpack.c.b16 %v1884, %v1883
        %1889 = vmatpush.bf16.msra.mxu0 %v619
        %1890 = vmatpush.bf16.msra.mxu0 %v615
        %1891 = vmatpush.bf16.msra.mxu0 %v611
        %1892 = vmatpush.bf16.msra.mxu0 %v607
        %1893 = vmatpush.bf16.msra.mxu0 %v603
        %1894 = vmatpush.bf16.msra.mxu0 %v599
        %1895 = vmatpush.bf16.msra.mxu0 %v595
        %1896 = vmatpush.bf16.msra.mxu0 %v591
        %1897 = vmatmul.bf16.gmra.mxu0 %v1885
        %v1898 = vpop.f32.mrf.mxu0
        %v1899 = vadd.f32 %v475, %v1898
        %v1900 = vpop.f32.mrf.mxu0
        %v1901 = vadd.f32 %v475, %v1900
        %1902 = vmatmul.bf16.gmra.mxu0 %v1886
        %v1903 = vpop.f32.mrf.mxu0
        %v1904 = vadd.f32 %v475, %v1903
        %v1905 = vpop.f32.mrf.mxu0
        %v1906 = vadd.f32 %v475, %v1905
        %1907 = vdwg.mxu0
        %1908 = vmatpush.bf16.msra.mxu0 %v620
        %1909 = vmatpush.bf16.msra.mxu0 %v616
        %1910 = vmatpush.bf16.msra.mxu0 %v612
        %1911 = vmatpush.bf16.msra.mxu0 %v608
        %1912 = vmatpush.bf16.msra.mxu0 %v604
        %1913 = vmatpush.bf16.msra.mxu0 %v600
        %1914 = vmatpush.bf16.msra.mxu0 %v596
        %1915 = vmatpush.bf16.msra.mxu0 %v592
        %1916 = vmatmul.bf16.gmra.mxu0 %v1885
        %v1917 = vpop.f32.mrf.mxu0
        %v1918 = vadd.f32 %v476, %v1917
        %v1919 = vpop.f32.mrf.mxu0
        %v1920 = vadd.f32 %v476, %v1919
        %1921 = vmatmul.bf16.gmra.mxu0 %v1886
        %v1922 = vpop.f32.mrf.mxu0
        %v1923 = vadd.f32 %v476, %v1922
        %v1924 = vpop.f32.mrf.mxu0
        %v1925 = vadd.f32 %v476, %v1924
        %1926 = vdwg.mxu0
        %1927 = vmatpush.bf16.msra.mxu0 %v621
        %1928 = vmatpush.bf16.msra.mxu0 %v617
        %1929 = vmatpush.bf16.msra.mxu0 %v613
        %1930 = vmatpush.bf16.msra.mxu0 %v609
        %1931 = vmatpush.bf16.msra.mxu0 %v605
        %1932 = vmatpush.bf16.msra.mxu0 %v601
        %1933 = vmatpush.bf16.msra.mxu0 %v597
        %1934 = vmatpush.bf16.msra.mxu0 %v593
        %1935 = vmatmul.bf16.gmra.mxu0 %v1885
        %v1936 = vpop.f32.mrf.mxu0
        %v1937 = vadd.f32 %v477, %v1936
        %v1938 = vpop.f32.mrf.mxu0
        %v1939 = vadd.f32 %v477, %v1938
        %1940 = vmatmul.bf16.gmra.mxu0 %v1886
        %v1941 = vpop.f32.mrf.mxu0
        %v1942 = vadd.f32 %v477, %v1941
        %v1943 = vpop.f32.mrf.mxu0
        %v1944 = vadd.f32 %v477, %v1943
        %1945 = vdwg.mxu0
        %1946 = vmatpush.bf16.msra.mxu0 %v622
        %1947 = vmatpush.bf16.msra.mxu0 %v618
        %1948 = vmatpush.bf16.msra.mxu0 %v614
        %1949 = vmatpush.bf16.msra.mxu0 %v610
        %1950 = vmatpush.bf16.msra.mxu0 %v606
        %1951 = vmatpush.bf16.msra.mxu0 %v602
        %1952 = vmatpush.bf16.msra.mxu0 %v598
        %1953 = vmatpush.bf16.msra.mxu0 %v594
        %1954 = vmatmul.bf16.gmra.mxu0 %v1885
        %v1955 = vpop.f32.mrf.mxu0
        %v1956 = vadd.f32 %v478, %v1955
        %v1957 = vpop.f32.mrf.mxu0
        %v1958 = vadd.f32 %v478, %v1957
        %1959 = vmatmul.bf16.gmra.mxu0 %v1886
        %v1960 = vpop.f32.mrf.mxu0
        %v1961 = vadd.f32 %v478, %v1960
        %v1962 = vpop.f32.mrf.mxu0
        %v1963 = vadd.f32 %v478, %v1962
        %1964 = vdwg.mxu0
        %v1965 = vtanh.pop %v1899
        %v1966 = vtanh.pop %v1918
        %v1967 = vtanh.pop %v1937
        %v1968 = vtanh.pop %v1956
        %v1969 = vtanh.pop %v1901
        %v1970 = vtanh.pop %v1920
        %v1971 = vtanh.pop %v1939
        %v1972 = vtanh.pop %v1958
        %v1973 = vtanh.pop %v1904
        %v1974 = vtanh.pop %v1923
        %v1975 = vtanh.pop %v1942
        %v1976 = vtanh.pop %v1961
        %v1977 = vtanh.pop %v1906
        %v1978 = vtanh.pop %v1925
        %v1979 = vtanh.pop %v1944
        %v1980 = vtanh.pop %v1963
        %v1981 = vpack.c.bf16 %v1969, %v1965
        %v1982 = vpack.c.bf16 %v1970, %v1966
        %v1983 = vpack.c.bf16 %v1971, %v1967
        %v1984 = vpack.c.bf16 %v1972, %v1968
        %v1985 = vpack.c.bf16 %v1977, %v1973
        %v1986 = vpack.c.bf16 %v1978, %v1974
        %v1987 = vpack.c.bf16 %v1979, %v1975
        %v1988 = vpack.c.bf16 %v1980, %v1976
        %1989 = vmatpush.bf16.msra.mxu0 %v966
        %1990 = vmatpush.bf16.msra.mxu0 %v964
        %1991 = vmatpush.bf16.msra.mxu0 %v962
        %1992 = vmatpush.bf16.msra.mxu0 %v960
        %1993 = vmatpush.bf16.msra.mxu0 %v958
        %1994 = vmatpush.bf16.msra.mxu0 %v956
        %1995 = vmatpush.bf16.msra.mxu0 %v954
        %1996 = vmatpush.bf16.msra.mxu0 %v952
        %1997 = vmatmul.bf16.gmra.mxu0 %v1981
        %v1998 = vpop.f32.mrf.mxu0
        %v1999 = vadd.f32 %v756, %v1998
        %v2000 = vpop.f32.mrf.mxu0
        %v2001 = vadd.f32 %v756, %v2000
        %2002 = vmatmul.bf16.gmra.mxu0 %v1985
        %v2003 = vpop.f32.mrf.mxu0
        %v2004 = vadd.f32 %v756, %v2003
        %v2005 = vpop.f32.mrf.mxu0
        %v2006 = vadd.f32 %v756, %v2005
        %2007 = vdwg.mxu0
        %2008 = vmatpush.bf16.msra.mxu0 %v982
        %2009 = vmatpush.bf16.msra.mxu0 %v980
        %2010 = vmatpush.bf16.msra.mxu0 %v978
        %2011 = vmatpush.bf16.msra.mxu0 %v976
        %2012 = vmatpush.bf16.msra.mxu0 %v974
        %2013 = vmatpush.bf16.msra.mxu0 %v972
        %2014 = vmatpush.bf16.msra.mxu0 %v970
        %2015 = vmatpush.bf16.msra.mxu0 %v968
        %2016 = vmatmul.bf16.gmra.mxu0 %v1982
        %v2017 = vpop.f32.mrf.mxu0
        %v2018 = vadd.f32 %v1999, %v2017
        %v2019 = vpop.f32.mrf.mxu0
        %v2020 = vadd.f32 %v2001, %v2019
        %2021 = vmatmul.bf16.gmra.mxu0 %v1986
        %v2022 = vpop.f32.mrf.mxu0
        %v2023 = vadd.f32 %v2004, %v2022
        %v2024 = vpop.f32.mrf.mxu0
        %v2025 = vadd.f32 %v2006, %v2024
        %2026 = vdwg.mxu0
        %2027 = vmatpush.bf16.msra.mxu0 %v998
        %2028 = vmatpush.bf16.msra.mxu0 %v996
        %2029 = vmatpush.bf16.msra.mxu0 %v994
        %2030 = vmatpush.bf16.msra.mxu0 %v992
        %2031 = vmatpush.bf16.msra.mxu0 %v990
        %2032 = vmatpush.bf16.msra.mxu0 %v988
        %2033 = vmatpush.bf16.msra.mxu0 %v986
        %2034 = vmatpush.bf16.msra.mxu0 %v984
        %2035 = vmatmul.bf16.gmra.mxu0 %v1983
        %v2036 = vpop.f32.mrf.mxu0
        %v2037 = vadd.f32 %v2018, %v2036
        %v2038 = vpop.f32.mrf.mxu0
        %v2039 = vadd.f32 %v2020, %v2038
        %2040 = vmatmul.bf16.gmra.mxu0 %v1987
        %v2041 = vpop.f32.mrf.mxu0
        %v2042 = vadd.f32 %v2023, %v2041
        %v2043 = vpop.f32.mrf.mxu0
        %v2044 = vadd.f32 %v2025, %v2043
        %2045 = vdwg.mxu0
        %2046 = vmatpush.bf16.msra.mxu0 %v1014
        %2047 = vmatpush.bf16.msra.mxu0 %v1012
        %2048 = vmatpush.bf16.msra.mxu0 %v1010
        %2049 = vmatpush.bf16.msra.mxu0 %v1008
        %2050 = vmatpush.bf16.msra.mxu0 %v1006
        %2051 = vmatpush.bf16.msra.mxu0 %v1004
        %2052 = vmatpush.bf16.msra.mxu0 %v1002
        %2053 = vmatpush.bf16.msra.mxu0 %v1000
        %2054 = vmatmul.bf16.gmra.mxu0 %v1984
        %v2055 = vpop.f32.mrf.mxu0
        %v2056 = vadd.f32 %v2037, %v2055
        %v2057 = vpop.f32.mrf.mxu0
        %v2058 = vadd.f32 %v2039, %v2057
        %2059 = vmatmul.bf16.gmra.mxu0 %v1988
        %v2060 = vpop.f32.mrf.mxu0
        %v2061 = vadd.f32 %v2042, %v2060
        %v2062 = vpop.f32.mrf.mxu0
        %v2063 = vadd.f32 %v2044, %v2062
        %2064 = vdwg.mxu0
        %2065 = vmatpush.bf16.msra.mxu0 %v967
        %2066 = vmatpush.bf16.msra.mxu0 %v965
        %2067 = vmatpush.bf16.msra.mxu0 %v963
        %2068 = vmatpush.bf16.msra.mxu0 %v961
        %2069 = vmatpush.bf16.msra.mxu0 %v959
        %2070 = vmatpush.bf16.msra.mxu0 %v957
        %2071 = vmatpush.bf16.msra.mxu0 %v955
        %2072 = vmatpush.bf16.msra.mxu0 %v953
        %2073 = vmatmul.bf16.gmra.mxu0 %v1981
        %v2074 = vpop.f32.mrf.mxu0
        %v2075 = vadd.f32 %v757, %v2074
        %v2076 = vpop.f32.mrf.mxu0
        %v2077 = vadd.f32 %v757, %v2076
        %2078 = vmatmul.bf16.gmra.mxu0 %v1985
        %v2079 = vpop.f32.mrf.mxu0
        %v2080 = vadd.f32 %v757, %v2079
        %v2081 = vpop.f32.mrf.mxu0
        %v2082 = vadd.f32 %v757, %v2081
        %2083 = vdwg.mxu0
        %2084 = vmatpush.bf16.msra.mxu0 %v983
        %2085 = vmatpush.bf16.msra.mxu0 %v981
        %2086 = vmatpush.bf16.msra.mxu0 %v979
        %2087 = vmatpush.bf16.msra.mxu0 %v977
        %2088 = vmatpush.bf16.msra.mxu0 %v975
        %2089 = vmatpush.bf16.msra.mxu0 %v973
        %2090 = vmatpush.bf16.msra.mxu0 %v971
        %2091 = vmatpush.bf16.msra.mxu0 %v969
        %2092 = vmatmul.bf16.gmra.mxu0 %v1982
        %v2093 = vpop.f32.mrf.mxu0
        %v2094 = vadd.f32 %v2075, %v2093
        %v2095 = vpop.f32.mrf.mxu0
        %v2096 = vadd.f32 %v2077, %v2095
        %2097 = vmatmul.bf16.gmra.mxu0 %v1986
        %v2098 = vpop.f32.mrf.mxu0
        %v2099 = vadd.f32 %v2080, %v2098
        %v2100 = vpop.f32.mrf.mxu0
        %v2101 = vadd.f32 %v2082, %v2100
        %2102 = vdwg.mxu0
        %2103 = vmatpush.bf16.msra.mxu0 %v999
        %2104 = vmatpush.bf16.msra.mxu0 %v997
        %2105 = vmatpush.bf16.msra.mxu0 %v995
        %2106 = vmatpush.bf16.msra.mxu0 %v993
        %2107 = vmatpush.bf16.msra.mxu0 %v991
        %2108 = vmatpush.bf16.msra.mxu0 %v989
        %2109 = vmatpush.bf16.msra.mxu0 %v987
        %2110 = vmatpush.bf16.msra.mxu0 %v985
        %2111 = vmatmul.bf16.gmra.mxu0 %v1983
        %v2112 = vpop.f32.mrf.mxu0
        %v2113 = vadd.f32 %v2094, %v2112
        %v2114 = vpop.f32.mrf.mxu0
        %v2115 = vadd.f32 %v2096, %v2114
        %2116 = vmatmul.bf16.gmra.mxu0 %v1987
        %v2117 = vpop.f32.mrf.mxu0
        %v2118 = vadd.f32 %v2099, %v2117
        %v2119 = vpop.f32.mrf.mxu0
        %v2120 = vadd.f32 %v2101, %v2119
        %2121 = vdwg.mxu0
        %2122 = vmatpush.bf16.msra.mxu0 %v1015
        %2123 = vmatpush.bf16.msra.mxu0 %v1013
        %2124 = vmatpush.bf16.msra.mxu0 %v1011
        %2125 = vmatpush.bf16.msra.mxu0 %v1009
        %2126 = vmatpush.bf16.msra.mxu0 %v1007
        %2127 = vmatpush.bf16.msra.mxu0 %v1005
        %2128 = vmatpush.bf16.msra.mxu0 %v1003
        %2129 = vmatpush.bf16.msra.mxu0 %v1001
        %2130 = vmatmul.bf16.gmra.mxu0 %v1984
        %v2131 = vpop.f32.mrf.mxu0
        %v2132 = vadd.f32 %v2113, %v2131
        %v2133 = vpop.f32.mrf.mxu0
        %v2134 = vadd.f32 %v2115, %v2133
        %2135 = vmatmul.bf16.gmra.mxu0 %v1988
        %v2136 = vpop.f32.mrf.mxu0
        %v2137 = vadd.f32 %v2118, %v2136
        %v2138 = vpop.f32.mrf.mxu0
        %v2139 = vadd.f32 %v2120, %v2138
        %2140 = vdwg.mxu0
        %v2141 = vtanh.pop %v2056
        %v2142 = vtanh.pop %v2132
        %v2143 = vtanh.pop %v2058
        %v2144 = vtanh.pop %v2134
        %v2145 = vtanh.pop %v2061
        %v2146 = vtanh.pop %v2137
        %v2147 = vtanh.pop %v2063
        %v2148 = vtanh.pop %v2139
        %v2149 = vpack.c.bf16 %v2143, %v2141
        %v2150 = vpack.c.bf16 %v2144, %v2142
        %v2151 = vpack.c.bf16 %v2147, %v2145
        %v2152 = vpack.c.bf16 %v2148, %v2146
        %2153 = vmatpush.bf16.msra.mxu0 %v1359
        %2154 = vmatpush.bf16.msra.mxu0 %v1357
        %2155 = vmatpush.bf16.msra.mxu0 %v1355
        %2156 = vmatpush.bf16.msra.mxu0 %v1353
        %2157 = vmatpush.bf16.msra.mxu0 %v1351
        %2158 = vmatpush.bf16.msra.mxu0 %v1349
        %2159 = vmatpush.bf16.msra.mxu0 %v1347
        %2160 = vmatpush.bf16.msra.mxu0 %v1345
        %2161 = vmatmul.bf16.gmra.mxu0 %v2149
        %v2162 = vpop.f32.mrf.mxu0
        %v2163 = vadd.f32 %v1245, %v2162
        %v2164 = vpop.f32.mrf.mxu0
        %v2165 = vadd.f32 %v1245, %v2164
        %2166 = vmatmul.bf16.gmra.mxu0 %v2151
        %v2167 = vpop.f32.mrf.mxu0
        %v2168 = vadd.f32 %v1245, %v2167
        %v2169 = vpop.f32.mrf.mxu0
        %v2170 = vadd.f32 %v1245, %v2169
        %2171 = vdwg.mxu0
        %2172 = vmatpush.bf16.msra.mxu0 %v1375
        %2173 = vmatpush.bf16.msra.mxu0 %v1373
        %2174 = vmatpush.bf16.msra.mxu0 %v1371
        %2175 = vmatpush.bf16.msra.mxu0 %v1369
        %2176 = vmatpush.bf16.msra.mxu0 %v1367
        %2177 = vmatpush.bf16.msra.mxu0 %v1365
        %2178 = vmatpush.bf16.msra.mxu0 %v1363
        %2179 = vmatpush.bf16.msra.mxu0 %v1361
        %2180 = vmatmul.bf16.gmra.mxu0 %v2150
        %v2181 = vpop.f32.mrf.mxu0
        %v2182 = vadd.f32 %v2163, %v2181
        %v2183 = vpop.f32.mrf.mxu0
        %v2184 = vadd.f32 %v2165, %v2183
        %2185 = vmatmul.bf16.gmra.mxu0 %v2152
        %v2186 = vpop.f32.mrf.mxu0
        %v2187 = vadd.f32 %v2168, %v2186
        %v2188 = vpop.f32.mrf.mxu0
        %v2189 = vadd.f32 %v2170, %v2188
        %2190 = vdwg.mxu0
        %2191 = vmatpush.bf16.msra.mxu0 %v1360
        %2192 = vmatpush.bf16.msra.mxu0 %v1358
        %2193 = vmatpush.bf16.msra.mxu0 %v1356
        %2194 = vmatpush.bf16.msra.mxu0 %v1354
        %2195 = vmatpush.bf16.msra.mxu0 %v1352
        %2196 = vmatpush.bf16.msra.mxu0 %v1350
        %2197 = vmatpush.bf16.msra.mxu0 %v1348
        %2198 = vmatpush.bf16.msra.mxu0 %v1346
        %2199 = vmatmul.bf16.gmra.mxu0 %v2149
        %v2200 = vpop.f32.mrf.mxu0
        %v2201 = vadd.f32 %v1246, %v2200
        %v2202 = vpop.f32.mrf.mxu0
        %v2203 = vadd.f32 %v1246, %v2202
        %2204 = vmatmul.bf16.gmra.mxu0 %v2151
        %v2205 = vpop.f32.mrf.mxu0
        %v2206 = vadd.f32 %v1246, %v2205
        %v2207 = vpop.f32.mrf.mxu0
        %v2208 = vadd.f32 %v1246, %v2207
        %2209 = vdwg.mxu0
        %2210 = vmatpush.bf16.msra.mxu0 %v1376
        %2211 = vmatpush.bf16.msra.mxu0 %v1374
        %2212 = vmatpush.bf16.msra.mxu0 %v1372
        %2213 = vmatpush.bf16.msra.mxu0 %v1370
        %2214 = vmatpush.bf16.msra.mxu0 %v1368
        %2215 = vmatpush.bf16.msra.mxu0 %v1366
        %2216 = vmatpush.bf16.msra.mxu0 %v1364
        %2217 = vmatpush.bf16.msra.mxu0 %v1362
        %2218 = vmatmul.bf16.gmra.mxu0 %v2150
        %v2219 = vpop.f32.mrf.mxu0
        %v2220 = vadd.f32 %v2201, %v2219
        %v2221 = vpop.f32.mrf.mxu0
        %v2222 = vadd.f32 %v2203, %v2221
        %2223 = vmatmul.bf16.gmra.mxu0 %v2152
        %v2224 = vpop.f32.mrf.mxu0
        %v2225 = vadd.f32 %v2206, %v2224
        %v2226 = vpop.f32.mrf.mxu0
        %v2227 = vadd.f32 %v2208, %v2226
        %2228 = vdwg.mxu0
        %v2229 = vtanh.pop %v2182
        %v2230 = vtanh.pop %v2220
        %v2231 = vtanh.pop %v2184
        %v2232 = vtanh.pop %v2222
        %v2233 = vtanh.pop %v2187
        %v2234 = vtanh.pop %v2225
        %v2235 = vtanh.pop %v2189
        %v2236 = vtanh.pop %v2227
        %2237 = vst [vmem:[%s318 + $0x80] sm:$0xff] %v2229
        %2238 = vst [vmem:[%s318 + $0x88] sm:$0xff] %v2230
        %2239 = vst [vmem:[%s318 + $0x90] sm:$0xff] %v2231
        %2240 = vst [vmem:[%s318 + $0x98] sm:$0xff] %v2232
        %2241 = vst [vmem:[%s318 + $0xa0] sm:$0xff] %v2233
        %2242 = vst [vmem:[%s318 + $0xa8] sm:$0xff] %v2234
        %2243 = vst [vmem:[%s318 + $0xb0] sm:$0xff] %v2235
        %2244 = vst [vmem:[%s318 + $0xb8] sm:$0xff] %v2236
        %v2245 = vld [vmem:[%s327 + $0x30] sm:$0xf]
        %v2246 = vld [vmem:[%s327 + $0x34] sm:$0xf]
        %v2247 = vld [vmem:[%s327 + $0x38] sm:$0xf]
        %v2248 = vld [vmem:[%s327 + $0x3c] sm:$0xf]
        %v2253 = vunpack.c.l.b16 %v2245
        %v2254 = vunpack.c.l.b16 %v2246
        %v2255 = vunpack.c.l.b16 %v2247
        %v2256 = vunpack.c.l.b16 %v2248
        %v2257 = vpack.c.b16 %v2254, %v2253
        %v2258 = vpack.c.b16 %v2256, %v2255
        %2261 = vmatpush.bf16.msra.mxu0 %v619
        %2262 = vmatpush.bf16.msra.mxu0 %v615
        %2263 = vmatpush.bf16.msra.mxu0 %v611
        %2264 = vmatpush.bf16.msra.mxu0 %v607
        %2265 = vmatpush.bf16.msra.mxu0 %v603
        %2266 = vmatpush.bf16.msra.mxu0 %v599
        %2267 = vmatpush.bf16.msra.mxu0 %v595
        %2268 = vmatpush.bf16.msra.mxu0 %v591
        %2269 = vmatmul.bf16.gmra.mxu0 %v2257
        %v2270 = vpop.f32.mrf.mxu0
        %v2271 = vadd.f32 %v475, %v2270
        %v2272 = vpop.f32.mrf.mxu0
        %v2273 = vadd.f32 %v475, %v2272
        %2274 = vmatmul.bf16.gmra.mxu0 %v2258
        %v2275 = vpop.f32.mrf.mxu0
        %v2276 = vadd.f32 %v475, %v2275
        %v2277 = vpop.f32.mrf.mxu0
        %v2278 = vadd.f32 %v475, %v2277
        %2279 = vdwg.mxu0
        %2280 = vmatpush.bf16.msra.mxu0 %v620
        %2281 = vmatpush.bf16.msra.mxu0 %v616
        %2282 = vmatpush.bf16.msra.mxu0 %v612
        %2283 = vmatpush.bf16.msra.mxu0 %v608
        %2284 = vmatpush.bf16.msra.mxu0 %v604
        %2285 = vmatpush.bf16.msra.mxu0 %v600
        %2286 = vmatpush.bf16.msra.mxu0 %v596
        %2287 = vmatpush.bf16.msra.mxu0 %v592
        %2288 = vmatmul.bf16.gmra.mxu0 %v2257
        %v2289 = vpop.f32.mrf.mxu0
        %v2290 = vadd.f32 %v476, %v2289
        %v2291 = vpop.f32.mrf.mxu0
        %v2292 = vadd.f32 %v476, %v2291
        %2293 = vmatmul.bf16.gmra.mxu0 %v2258
        %v2294 = vpop.f32.mrf.mxu0
        %v2295 = vadd.f32 %v476, %v2294
        %v2296 = vpop.f32.mrf.mxu0
        %v2297 = vadd.f32 %v476, %v2296
        %2298 = vdwg.mxu0
        %2299 = vmatpush.bf16.msra.mxu0 %v621
        %2300 = vmatpush.bf16.msra.mxu0 %v617
        %2301 = vmatpush.bf16.msra.mxu0 %v613
        %2302 = vmatpush.bf16.msra.mxu0 %v609
        %2303 = vmatpush.bf16.msra.mxu0 %v605
        %2304 = vmatpush.bf16.msra.mxu0 %v601
        %2305 = vmatpush.bf16.msra.mxu0 %v597
        %2306 = vmatpush.bf16.msra.mxu0 %v593
        %2307 = vmatmul.bf16.gmra.mxu0 %v2257
        %v2308 = vpop.f32.mrf.mxu0
        %v2309 = vadd.f32 %v477, %v2308
        %v2310 = vpop.f32.mrf.mxu0
        %v2311 = vadd.f32 %v477, %v2310
        %2312 = vmatmul.bf16.gmra.mxu0 %v2258
        %v2313 = vpop.f32.mrf.mxu0
        %v2314 = vadd.f32 %v477, %v2313
        %v2315 = vpop.f32.mrf.mxu0
        %v2316 = vadd.f32 %v477, %v2315
        %2317 = vdwg.mxu0
        %2318 = vmatpush.bf16.msra.mxu0 %v622
        %2319 = vmatpush.bf16.msra.mxu0 %v618
        %2320 = vmatpush.bf16.msra.mxu0 %v614
        %2321 = vmatpush.bf16.msra.mxu0 %v610
        %2322 = vmatpush.bf16.msra.mxu0 %v606
        %2323 = vmatpush.bf16.msra.mxu0 %v602
        %2324 = vmatpush.bf16.msra.mxu0 %v598
        %2325 = vmatpush.bf16.msra.mxu0 %v594
        %2326 = vmatmul.bf16.gmra.mxu0 %v2257
        %v2327 = vpop.f32.mrf.mxu0
        %v2328 = vadd.f32 %v478, %v2327
        %v2329 = vpop.f32.mrf.mxu0
        %v2330 = vadd.f32 %v478, %v2329
        %2331 = vmatmul.bf16.gmra.mxu0 %v2258
        %v2332 = vpop.f32.mrf.mxu0
        %v2333 = vadd.f32 %v478, %v2332
        %v2334 = vpop.f32.mrf.mxu0
        %v2335 = vadd.f32 %v478, %v2334
        %2336 = vdwg.mxu0
        %v2337 = vtanh.pop %v2271
        %v2338 = vtanh.pop %v2290
        %v2339 = vtanh.pop %v2309
        %v2340 = vtanh.pop %v2328
        %v2341 = vtanh.pop %v2273
        %v2342 = vtanh.pop %v2292
        %v2343 = vtanh.pop %v2311
        %v2344 = vtanh.pop %v2330
        %v2345 = vtanh.pop %v2276
        %v2346 = vtanh.pop %v2295
        %v2347 = vtanh.pop %v2314
        %v2348 = vtanh.pop %v2333
        %v2349 = vtanh.pop %v2278
        %v2350 = vtanh.pop %v2297
        %v2351 = vtanh.pop %v2316
        %v2352 = vtanh.pop %v2335
        %v2353 = vpack.c.bf16 %v2341, %v2337
        %v2354 = vpack.c.bf16 %v2342, %v2338
        %v2355 = vpack.c.bf16 %v2343, %v2339
        %v2356 = vpack.c.bf16 %v2344, %v2340
        %v2357 = vpack.c.bf16 %v2349, %v2345
        %v2358 = vpack.c.bf16 %v2350, %v2346
        %v2359 = vpack.c.bf16 %v2351, %v2347
        %v2360 = vpack.c.bf16 %v2352, %v2348
        %2361 = vmatpush.bf16.msra.mxu0 %v966
        %2362 = vmatpush.bf16.msra.mxu0 %v964
        %2363 = vmatpush.bf16.msra.mxu0 %v962
        %2364 = vmatpush.bf16.msra.mxu0 %v960
        %2365 = vmatpush.bf16.msra.mxu0 %v958
        %2366 = vmatpush.bf16.msra.mxu0 %v956
        %2367 = vmatpush.bf16.msra.mxu0 %v954
        %2368 = vmatpush.bf16.msra.mxu0 %v952
        %2369 = vmatmul.bf16.gmra.mxu0 %v2353
        %v2370 = vpop.f32.mrf.mxu0
        %v2371 = vadd.f32 %v756, %v2370
        %v2372 = vpop.f32.mrf.mxu0
        %v2373 = vadd.f32 %v756, %v2372
        %2374 = vmatmul.bf16.gmra.mxu0 %v2357
        %v2375 = vpop.f32.mrf.mxu0
        %v2376 = vadd.f32 %v756, %v2375
        %v2377 = vpop.f32.mrf.mxu0
        %v2378 = vadd.f32 %v756, %v2377
        %2379 = vdwg.mxu0
        %2380 = vmatpush.bf16.msra.mxu0 %v982
        %2381 = vmatpush.bf16.msra.mxu0 %v980
        %2382 = vmatpush.bf16.msra.mxu0 %v978
        %2383 = vmatpush.bf16.msra.mxu0 %v976
        %2384 = vmatpush.bf16.msra.mxu0 %v974
        %2385 = vmatpush.bf16.msra.mxu0 %v972
        %2386 = vmatpush.bf16.msra.mxu0 %v970
        %2387 = vmatpush.bf16.msra.mxu0 %v968
        %2388 = vmatmul.bf16.gmra.mxu0 %v2354
        %v2389 = vpop.f32.mrf.mxu0
        %v2390 = vadd.f32 %v2371, %v2389
        %v2391 = vpop.f32.mrf.mxu0
        %v2392 = vadd.f32 %v2373, %v2391
        %2393 = vmatmul.bf16.gmra.mxu0 %v2358
        %v2394 = vpop.f32.mrf.mxu0
        %v2395 = vadd.f32 %v2376, %v2394
        %v2396 = vpop.f32.mrf.mxu0
        %v2397 = vadd.f32 %v2378, %v2396
        %2398 = vdwg.mxu0
        %2399 = vmatpush.bf16.msra.mxu0 %v998
        %2400 = vmatpush.bf16.msra.mxu0 %v996
        %2401 = vmatpush.bf16.msra.mxu0 %v994
        %2402 = vmatpush.bf16.msra.mxu0 %v992
        %2403 = vmatpush.bf16.msra.mxu0 %v990
        %2404 = vmatpush.bf16.msra.mxu0 %v988
        %2405 = vmatpush.bf16.msra.mxu0 %v986
        %2406 = vmatpush.bf16.msra.mxu0 %v984
        %2407 = vmatmul.bf16.gmra.mxu0 %v2355
        %v2408 = vpop.f32.mrf.mxu0
        %v2409 = vadd.f32 %v2390, %v2408
        %v2410 = vpop.f32.mrf.mxu0
        %v2411 = vadd.f32 %v2392, %v2410
        %2412 = vmatmul.bf16.gmra.mxu0 %v2359
        %v2413 = vpop.f32.mrf.mxu0
        %v2414 = vadd.f32 %v2395, %v2413
        %v2415 = vpop.f32.mrf.mxu0
        %v2416 = vadd.f32 %v2397, %v2415
        %2417 = vdwg.mxu0
        %2418 = vmatpush.bf16.msra.mxu0 %v1014
        %2419 = vmatpush.bf16.msra.mxu0 %v1012
        %2420 = vmatpush.bf16.msra.mxu0 %v1010
        %2421 = vmatpush.bf16.msra.mxu0 %v1008
        %2422 = vmatpush.bf16.msra.mxu0 %v1006
        %2423 = vmatpush.bf16.msra.mxu0 %v1004
        %2424 = vmatpush.bf16.msra.mxu0 %v1002
        %2425 = vmatpush.bf16.msra.mxu0 %v1000
        %2426 = vmatmul.bf16.gmra.mxu0 %v2356
        %v2427 = vpop.f32.mrf.mxu0
        %v2428 = vadd.f32 %v2409, %v2427
        %v2429 = vpop.f32.mrf.mxu0
        %v2430 = vadd.f32 %v2411, %v2429
        %2431 = vmatmul.bf16.gmra.mxu0 %v2360
        %v2432 = vpop.f32.mrf.mxu0
        %v2433 = vadd.f32 %v2414, %v2432
        %v2434 = vpop.f32.mrf.mxu0
        %v2435 = vadd.f32 %v2416, %v2434
        %2436 = vdwg.mxu0
        %2437 = vmatpush.bf16.msra.mxu0 %v967
        %2438 = vmatpush.bf16.msra.mxu0 %v965
        %2439 = vmatpush.bf16.msra.mxu0 %v963
        %2440 = vmatpush.bf16.msra.mxu0 %v961
        %2441 = vmatpush.bf16.msra.mxu0 %v959
        %2442 = vmatpush.bf16.msra.mxu0 %v957
        %2443 = vmatpush.bf16.msra.mxu0 %v955
        %2444 = vmatpush.bf16.msra.mxu0 %v953
        %2445 = vmatmul.bf16.gmra.mxu0 %v2353
        %v2446 = vpop.f32.mrf.mxu0
        %v2447 = vadd.f32 %v757, %v2446
        %v2448 = vpop.f32.mrf.mxu0
        %v2449 = vadd.f32 %v757, %v2448
        %2450 = vmatmul.bf16.gmra.mxu0 %v2357
        %v2451 = vpop.f32.mrf.mxu0
        %v2452 = vadd.f32 %v757, %v2451
        %v2453 = vpop.f32.mrf.mxu0
        %v2454 = vadd.f32 %v757, %v2453
        %2455 = vdwg.mxu0
        %2456 = vmatpush.bf16.msra.mxu0 %v983
        %2457 = vmatpush.bf16.msra.mxu0 %v981
        %2458 = vmatpush.bf16.msra.mxu0 %v979
        %2459 = vmatpush.bf16.msra.mxu0 %v977
        %2460 = vmatpush.bf16.msra.mxu0 %v975
        %2461 = vmatpush.bf16.msra.mxu0 %v973
        %2462 = vmatpush.bf16.msra.mxu0 %v971
        %2463 = vmatpush.bf16.msra.mxu0 %v969
        %2464 = vmatmul.bf16.gmra.mxu0 %v2354
        %v2465 = vpop.f32.mrf.mxu0
        %v2466 = vadd.f32 %v2447, %v2465
        %v2467 = vpop.f32.mrf.mxu0
        %v2468 = vadd.f32 %v2449, %v2467
        %2469 = vmatmul.bf16.gmra.mxu0 %v2358
        %v2470 = vpop.f32.mrf.mxu0
        %v2471 = vadd.f32 %v2452, %v2470
        %v2472 = vpop.f32.mrf.mxu0
        %v2473 = vadd.f32 %v2454, %v2472
        %2474 = vdwg.mxu0
        %2475 = vmatpush.bf16.msra.mxu0 %v999
        %2476 = vmatpush.bf16.msra.mxu0 %v997
        %2477 = vmatpush.bf16.msra.mxu0 %v995
        %2478 = vmatpush.bf16.msra.mxu0 %v993
        %2479 = vmatpush.bf16.msra.mxu0 %v991
        %2480 = vmatpush.bf16.msra.mxu0 %v989
        %2481 = vmatpush.bf16.msra.mxu0 %v987
        %2482 = vmatpush.bf16.msra.mxu0 %v985
        %2483 = vmatmul.bf16.gmra.mxu0 %v2355
        %v2484 = vpop.f32.mrf.mxu0
        %v2485 = vadd.f32 %v2466, %v2484
        %v2486 = vpop.f32.mrf.mxu0
        %v2487 = vadd.f32 %v2468, %v2486
        %2488 = vmatmul.bf16.gmra.mxu0 %v2359
        %v2489 = vpop.f32.mrf.mxu0
        %v2490 = vadd.f32 %v2471, %v2489
        %v2491 = vpop.f32.mrf.mxu0
        %v2492 = vadd.f32 %v2473, %v2491
        %2493 = vdwg.mxu0
        %2494 = vmatpush.bf16.msra.mxu0 %v1015
        %2495 = vmatpush.bf16.msra.mxu0 %v1013
        %2496 = vmatpush.bf16.msra.mxu0 %v1011
        %2497 = vmatpush.bf16.msra.mxu0 %v1009
        %2498 = vmatpush.bf16.msra.mxu0 %v1007
        %2499 = vmatpush.bf16.msra.mxu0 %v1005
        %2500 = vmatpush.bf16.msra.mxu0 %v1003
        %2501 = vmatpush.bf16.msra.mxu0 %v1001
        %2502 = vmatmul.bf16.gmra.mxu0 %v2356
        %v2503 = vpop.f32.mrf.mxu0
        %v2504 = vadd.f32 %v2485, %v2503
        %v2505 = vpop.f32.mrf.mxu0
        %v2506 = vadd.f32 %v2487, %v2505
        %2507 = vmatmul.bf16.gmra.mxu0 %v2360
        %v2508 = vpop.f32.mrf.mxu0
        %v2509 = vadd.f32 %v2490, %v2508
        %v2510 = vpop.f32.mrf.mxu0
        %v2511 = vadd.f32 %v2492, %v2510
        %2512 = vdwg.mxu0
        %v2513 = vtanh.pop %v2428
        %v2514 = vtanh.pop %v2504
        %v2515 = vtanh.pop %v2430
        %v2516 = vtanh.pop %v2506
        %v2517 = vtanh.pop %v2433
        %v2518 = vtanh.pop %v2509
        %v2519 = vtanh.pop %v2435
        %v2520 = vtanh.pop %v2511
        %v2521 = vpack.c.bf16 %v2515, %v2513
        %v2522 = vpack.c.bf16 %v2516, %v2514
        %v2523 = vpack.c.bf16 %v2519, %v2517
        %v2524 = vpack.c.bf16 %v2520, %v2518
        %2525 = vmatpush.bf16.msra.mxu0 %v1359
        %2526 = vmatpush.bf16.msra.mxu0 %v1357
        %2527 = vmatpush.bf16.msra.mxu0 %v1355
        %2528 = vmatpush.bf16.msra.mxu0 %v1353
        %2529 = vmatpush.bf16.msra.mxu0 %v1351
        %2530 = vmatpush.bf16.msra.mxu0 %v1349
        %2531 = vmatpush.bf16.msra.mxu0 %v1347
        %2532 = vmatpush.bf16.msra.mxu0 %v1345
        %2533 = vmatmul.bf16.gmra.mxu0 %v2521
        %v2534 = vpop.f32.mrf.mxu0
        %v2535 = vadd.f32 %v1245, %v2534
        %v2536 = vpop.f32.mrf.mxu0
        %v2537 = vadd.f32 %v1245, %v2536
        %2538 = vmatmul.bf16.gmra.mxu0 %v2523
        %v2539 = vpop.f32.mrf.mxu0
        %v2540 = vadd.f32 %v1245, %v2539
        %v2541 = vpop.f32.mrf.mxu0
        %v2542 = vadd.f32 %v1245, %v2541
        %2543 = vdwg.mxu0
        %2544 = vmatpush.bf16.msra.mxu0 %v1375
        %2545 = vmatpush.bf16.msra.mxu0 %v1373
        %2546 = vmatpush.bf16.msra.mxu0 %v1371
        %2547 = vmatpush.bf16.msra.mxu0 %v1369
        %2548 = vmatpush.bf16.msra.mxu0 %v1367
        %2549 = vmatpush.bf16.msra.mxu0 %v1365
        %2550 = vmatpush.bf16.msra.mxu0 %v1363
        %2551 = vmatpush.bf16.msra.mxu0 %v1361
        %2552 = vmatmul.bf16.gmra.mxu0 %v2522
        %v2553 = vpop.f32.mrf.mxu0
        %v2554 = vadd.f32 %v2535, %v2553
        %v2555 = vpop.f32.mrf.mxu0
        %v2556 = vadd.f32 %v2537, %v2555
        %2557 = vmatmul.bf16.gmra.mxu0 %v2524
        %v2558 = vpop.f32.mrf.mxu0
        %v2559 = vadd.f32 %v2540, %v2558
        %v2560 = vpop.f32.mrf.mxu0
        %v2561 = vadd.f32 %v2542, %v2560
        %2562 = vdwg.mxu0
        %2563 = vmatpush.bf16.msra.mxu0 %v1360
        %2564 = vmatpush.bf16.msra.mxu0 %v1358
        %2565 = vmatpush.bf16.msra.mxu0 %v1356
        %2566 = vmatpush.bf16.msra.mxu0 %v1354
        %2567 = vmatpush.bf16.msra.mxu0 %v1352
        %2568 = vmatpush.bf16.msra.mxu0 %v1350
        %2569 = vmatpush.bf16.msra.mxu0 %v1348
        %2570 = vmatpush.bf16.msra.mxu0 %v1346
        %2571 = vmatmul.bf16.gmra.mxu0 %v2521
        %v2572 = vpop.f32.mrf.mxu0
        %v2573 = vadd.f32 %v1246, %v2572
        %v2574 = vpop.f32.mrf.mxu0
        %v2575 = vadd.f32 %v1246, %v2574
        %2576 = vmatmul.bf16.gmra.mxu0 %v2523
        %v2577 = vpop.f32.mrf.mxu0
        %v2578 = vadd.f32 %v1246, %v2577
        %v2579 = vpop.f32.mrf.mxu0
        %v2580 = vadd.f32 %v1246, %v2579
        %2581 = vdwg.mxu0
        %2582 = vmatpush.bf16.msra.mxu0 %v1376
        %2583 = vmatpush.bf16.msra.mxu0 %v1374
        %2584 = vmatpush.bf16.msra.mxu0 %v1372
        %2585 = vmatpush.bf16.msra.mxu0 %v1370
        %2586 = vmatpush.bf16.msra.mxu0 %v1368
        %2587 = vmatpush.bf16.msra.mxu0 %v1366
        %2588 = vmatpush.bf16.msra.mxu0 %v1364
        %2589 = vmatpush.bf16.msra.mxu0 %v1362
        %2590 = vmatmul.bf16.gmra.mxu0 %v2522
        %v2591 = vpop.f32.mrf.mxu0
        %v2592 = vadd.f32 %v2573, %v2591
        %v2593 = vpop.f32.mrf.mxu0
        %v2594 = vadd.f32 %v2575, %v2593
        %2595 = vmatmul.bf16.gmra.mxu0 %v2524
        %v2596 = vpop.f32.mrf.mxu0
        %v2597 = vadd.f32 %v2578, %v2596
        %v2598 = vpop.f32.mrf.mxu0
        %v2599 = vadd.f32 %v2580, %v2598
        %2600 = vdwg.mxu0
        %v2601 = vtanh.pop %v2554
        %v2602 = vtanh.pop %v2592
        %v2603 = vtanh.pop %v2556
        %v2604 = vtanh.pop %v2594
        %v2605 = vtanh.pop %v2559
        %v2606 = vtanh.pop %v2597
        %v2607 = vtanh.pop %v2561
        %v2608 = vtanh.pop %v2599
        %2609 = vst [vmem:[%s318 + $0xc0] sm:$0xff] %v2601
        %2610 = vst [vmem:[%s318 + $0xc8] sm:$0xff] %v2602
        %2611 = vst [vmem:[%s318 + $0xd0] sm:$0xff] %v2603
        %2612 = vst [vmem:[%s318 + $0xd8] sm:$0xff] %v2604
        %2613 = vst [vmem:[%s318 + $0xe0] sm:$0xff] %v2605
        %2614 = vst [vmem:[%s318 + $0xe8] sm:$0xff] %v2606
        %2615 = vst [vmem:[%s318 + $0xf0] sm:$0xff] %v2607
        %2616 = vst [vmem:[%s318 + $0xf8] sm:$0xff] %v2608
        %v2617 = vld [vmem:[%s327 + $0x40] sm:$0xf]
        %v2618 = vld [vmem:[%s327 + $0x44] sm:$0xf]
        %v2619 = vld [vmem:[%s327 + $0x48] sm:$0xf]
        %v2620 = vld [vmem:[%s327 + $0x4c] sm:$0xf]
        %v2625 = vunpack.c.l.b16 %v2617
        %v2626 = vunpack.c.l.b16 %v2618
        %v2627 = vunpack.c.l.b16 %v2619
        %v2628 = vunpack.c.l.b16 %v2620
        %v2629 = vpack.c.b16 %v2626, %v2625
        %v2630 = vpack.c.b16 %v2628, %v2627
        %2633 = vmatpush.bf16.msra.mxu0 %v619
        %2634 = vmatpush.bf16.msra.mxu0 %v615
        %2635 = vmatpush.bf16.msra.mxu0 %v611
        %2636 = vmatpush.bf16.msra.mxu0 %v607
        %2637 = vmatpush.bf16.msra.mxu0 %v603
        %2638 = vmatpush.bf16.msra.mxu0 %v599
        %2639 = vmatpush.bf16.msra.mxu0 %v595
        %2640 = vmatpush.bf16.msra.mxu0 %v591
        %2641 = vmatmul.bf16.gmra.mxu0 %v2629
        %v2642 = vpop.f32.mrf.mxu0
        %v2643 = vadd.f32 %v475, %v2642
        %v2644 = vpop.f32.mrf.mxu0
        %v2645 = vadd.f32 %v475, %v2644
        %2646 = vmatmul.bf16.gmra.mxu0 %v2630
        %v2647 = vpop.f32.mrf.mxu0
        %v2648 = vadd.f32 %v475, %v2647
        %v2649 = vpop.f32.mrf.mxu0
        %v2650 = vadd.f32 %v475, %v2649
        %2651 = vdwg.mxu0
        %2652 = vmatpush.bf16.msra.mxu0 %v620
        %2653 = vmatpush.bf16.msra.mxu0 %v616
        %2654 = vmatpush.bf16.msra.mxu0 %v612
        %2655 = vmatpush.bf16.msra.mxu0 %v608
        %2656 = vmatpush.bf16.msra.mxu0 %v604
        %2657 = vmatpush.bf16.msra.mxu0 %v600
        %2658 = vmatpush.bf16.msra.mxu0 %v596
        %2659 = vmatpush.bf16.msra.mxu0 %v592
        %2660 = vmatmul.bf16.gmra.mxu0 %v2629
        %v2661 = vpop.f32.mrf.mxu0
        %v2662 = vadd.f32 %v476, %v2661
        %v2663 = vpop.f32.mrf.mxu0
        %v2664 = vadd.f32 %v476, %v2663
        %2665 = vmatmul.bf16.gmra.mxu0 %v2630
        %v2666 = vpop.f32.mrf.mxu0
        %v2667 = vadd.f32 %v476, %v2666
        %v2668 = vpop.f32.mrf.mxu0
        %v2669 = vadd.f32 %v476, %v2668
        %2670 = vdwg.mxu0
        %2671 = vmatpush.bf16.msra.mxu0 %v621
        %2672 = vmatpush.bf16.msra.mxu0 %v617
        %2673 = vmatpush.bf16.msra.mxu0 %v613
        %2674 = vmatpush.bf16.msra.mxu0 %v609
        %2675 = vmatpush.bf16.msra.mxu0 %v605
        %2676 = vmatpush.bf16.msra.mxu0 %v601
        %2677 = vmatpush.bf16.msra.mxu0 %v597
        %2678 = vmatpush.bf16.msra.mxu0 %v593
        %2679 = vmatmul.bf16.gmra.mxu0 %v2629
        %v2680 = vpop.f32.mrf.mxu0
        %v2681 = vadd.f32 %v477, %v2680
        %v2682 = vpop.f32.mrf.mxu0
        %v2683 = vadd.f32 %v477, %v2682
        %2684 = vmatmul.bf16.gmra.mxu0 %v2630
        %v2685 = vpop.f32.mrf.mxu0
        %v2686 = vadd.f32 %v477, %v2685
        %v2687 = vpop.f32.mrf.mxu0
        %v2688 = vadd.f32 %v477, %v2687
        %2689 = vdwg.mxu0
        %2690 = vmatpush.bf16.msra.mxu0 %v622
        %2691 = vmatpush.bf16.msra.mxu0 %v618
        %2692 = vmatpush.bf16.msra.mxu0 %v614
        %2693 = vmatpush.bf16.msra.mxu0 %v610
        %2694 = vmatpush.bf16.msra.mxu0 %v606
        %2695 = vmatpush.bf16.msra.mxu0 %v602
        %2696 = vmatpush.bf16.msra.mxu0 %v598
        %2697 = vmatpush.bf16.msra.mxu0 %v594
        %2698 = vmatmul.bf16.gmra.mxu0 %v2629
        %v2699 = vpop.f32.mrf.mxu0
        %v2700 = vadd.f32 %v478, %v2699
        %v2701 = vpop.f32.mrf.mxu0
        %v2702 = vadd.f32 %v478, %v2701
        %2703 = vmatmul.bf16.gmra.mxu0 %v2630
        %v2704 = vpop.f32.mrf.mxu0
        %v2705 = vadd.f32 %v478, %v2704
        %v2706 = vpop.f32.mrf.mxu0
        %v2707 = vadd.f32 %v478, %v2706
        %2708 = vdwg.mxu0
        %v2709 = vtanh.pop %v2643
        %v2710 = vtanh.pop %v2662
        %v2711 = vtanh.pop %v2681
        %v2712 = vtanh.pop %v2700
        %v2713 = vtanh.pop %v2645
        %v2714 = vtanh.pop %v2664
        %v2715 = vtanh.pop %v2683
        %v2716 = vtanh.pop %v2702
        %v2717 = vtanh.pop %v2648
        %v2718 = vtanh.pop %v2667
        %v2719 = vtanh.pop %v2686
        %v2720 = vtanh.pop %v2705
        %v2721 = vtanh.pop %v2650
        %v2722 = vtanh.pop %v2669
        %v2723 = vtanh.pop %v2688
        %v2724 = vtanh.pop %v2707
        %v2725 = vpack.c.bf16 %v2713, %v2709
        %v2726 = vpack.c.bf16 %v2714, %v2710
        %v2727 = vpack.c.bf16 %v2715, %v2711
        %v2728 = vpack.c.bf16 %v2716, %v2712
        %v2729 = vpack.c.bf16 %v2721, %v2717
        %v2730 = vpack.c.bf16 %v2722, %v2718
        %v2731 = vpack.c.bf16 %v2723, %v2719
        %v2732 = vpack.c.bf16 %v2724, %v2720
        %2733 = vmatpush.bf16.msra.mxu0 %v966
        %2734 = vmatpush.bf16.msra.mxu0 %v964
        %2735 = vmatpush.bf16.msra.mxu0 %v962
        %2736 = vmatpush.bf16.msra.mxu0 %v960
        %2737 = vmatpush.bf16.msra.mxu0 %v958
        %2738 = vmatpush.bf16.msra.mxu0 %v956
        %2739 = vmatpush.bf16.msra.mxu0 %v954
        %2740 = vmatpush.bf16.msra.mxu0 %v952
        %2741 = vmatmul.bf16.gmra.mxu0 %v2725
        %v2742 = vpop.f32.mrf.mxu0
        %v2743 = vadd.f32 %v756, %v2742
        %v2744 = vpop.f32.mrf.mxu0
        %v2745 = vadd.f32 %v756, %v2744
        %2746 = vmatmul.bf16.gmra.mxu0 %v2729
        %v2747 = vpop.f32.mrf.mxu0
        %v2748 = vadd.f32 %v756, %v2747
        %v2749 = vpop.f32.mrf.mxu0
        %v2750 = vadd.f32 %v756, %v2749
        %2751 = vdwg.mxu0
        %2752 = vmatpush.bf16.msra.mxu0 %v982
        %2753 = vmatpush.bf16.msra.mxu0 %v980
        %2754 = vmatpush.bf16.msra.mxu0 %v978
        %2755 = vmatpush.bf16.msra.mxu0 %v976
        %2756 = vmatpush.bf16.msra.mxu0 %v974
        %2757 = vmatpush.bf16.msra.mxu0 %v972
        %2758 = vmatpush.bf16.msra.mxu0 %v970
        %2759 = vmatpush.bf16.msra.mxu0 %v968
        %2760 = vmatmul.bf16.gmra.mxu0 %v2726
        %v2761 = vpop.f32.mrf.mxu0
        %v2762 = vadd.f32 %v2743, %v2761
        %v2763 = vpop.f32.mrf.mxu0
        %v2764 = vadd.f32 %v2745, %v2763
        %2765 = vmatmul.bf16.gmra.mxu0 %v2730
        %v2766 = vpop.f32.mrf.mxu0
        %v2767 = vadd.f32 %v2748, %v2766
        %v2768 = vpop.f32.mrf.mxu0
        %v2769 = vadd.f32 %v2750, %v2768
        %2770 = vdwg.mxu0
        %2771 = vmatpush.bf16.msra.mxu0 %v998
        %2772 = vmatpush.bf16.msra.mxu0 %v996
        %2773 = vmatpush.bf16.msra.mxu0 %v994
        %2774 = vmatpush.bf16.msra.mxu0 %v992
        %2775 = vmatpush.bf16.msra.mxu0 %v990
        %2776 = vmatpush.bf16.msra.mxu0 %v988
        %2777 = vmatpush.bf16.msra.mxu0 %v986
        %2778 = vmatpush.bf16.msra.mxu0 %v984
        %2779 = vmatmul.bf16.gmra.mxu0 %v2727
        %v2780 = vpop.f32.mrf.mxu0
        %v2781 = vadd.f32 %v2762, %v2780
        %v2782 = vpop.f32.mrf.mxu0
        %v2783 = vadd.f32 %v2764, %v2782
        %2784 = vmatmul.bf16.gmra.mxu0 %v2731
        %v2785 = vpop.f32.mrf.mxu0
        %v2786 = vadd.f32 %v2767, %v2785
        %v2787 = vpop.f32.mrf.mxu0
        %v2788 = vadd.f32 %v2769, %v2787
        %2789 = vdwg.mxu0
        %2790 = vmatpush.bf16.msra.mxu0 %v1014
        %2791 = vmatpush.bf16.msra.mxu0 %v1012
        %2792 = vmatpush.bf16.msra.mxu0 %v1010
        %2793 = vmatpush.bf16.msra.mxu0 %v1008
        %2794 = vmatpush.bf16.msra.mxu0 %v1006
        %2795 = vmatpush.bf16.msra.mxu0 %v1004
        %2796 = vmatpush.bf16.msra.mxu0 %v1002
        %2797 = vmatpush.bf16.msra.mxu0 %v1000
        %2798 = vmatmul.bf16.gmra.mxu0 %v2728
        %v2799 = vpop.f32.mrf.mxu0
        %v2800 = vadd.f32 %v2781, %v2799
        %v2801 = vpop.f32.mrf.mxu0
        %v2802 = vadd.f32 %v2783, %v2801
        %2803 = vmatmul.bf16.gmra.mxu0 %v2732
        %v2804 = vpop.f32.mrf.mxu0
        %v2805 = vadd.f32 %v2786, %v2804
        %v2806 = vpop.f32.mrf.mxu0
        %v2807 = vadd.f32 %v2788, %v2806
        %2808 = vdwg.mxu0
        %2809 = vmatpush.bf16.msra.mxu0 %v967
        %2810 = vmatpush.bf16.msra.mxu0 %v965
        %2811 = vmatpush.bf16.msra.mxu0 %v963
        %2812 = vmatpush.bf16.msra.mxu0 %v961
        %2813 = vmatpush.bf16.msra.mxu0 %v959
        %2814 = vmatpush.bf16.msra.mxu0 %v957
        %2815 = vmatpush.bf16.msra.mxu0 %v955
        %2816 = vmatpush.bf16.msra.mxu0 %v953
        %2817 = vmatmul.bf16.gmra.mxu0 %v2725
        %v2818 = vpop.f32.mrf.mxu0
        %v2819 = vadd.f32 %v757, %v2818
        %v2820 = vpop.f32.mrf.mxu0
        %v2821 = vadd.f32 %v757, %v2820
        %2822 = vmatmul.bf16.gmra.mxu0 %v2729
        %v2823 = vpop.f32.mrf.mxu0
        %v2824 = vadd.f32 %v757, %v2823
        %v2825 = vpop.f32.mrf.mxu0
        %v2826 = vadd.f32 %v757, %v2825
        %2827 = vdwg.mxu0
        %2828 = vmatpush.bf16.msra.mxu0 %v983
        %2829 = vmatpush.bf16.msra.mxu0 %v981
        %2830 = vmatpush.bf16.msra.mxu0 %v979
        %2831 = vmatpush.bf16.msra.mxu0 %v977
        %2832 = vmatpush.bf16.msra.mxu0 %v975
        %2833 = vmatpush.bf16.msra.mxu0 %v973
        %2834 = vmatpush.bf16.msra.mxu0 %v971
        %2835 = vmatpush.bf16.msra.mxu0 %v969
        %2836 = vmatmul.bf16.gmra.mxu0 %v2726
        %v2837 = vpop.f32.mrf.mxu0
        %v2838 = vadd.f32 %v2819, %v2837
        %v2839 = vpop.f32.mrf.mxu0
        %v2840 = vadd.f32 %v2821, %v2839
        %2841 = vmatmul.bf16.gmra.mxu0 %v2730
        %v2842 = vpop.f32.mrf.mxu0
        %v2843 = vadd.f32 %v2824, %v2842
        %v2844 = vpop.f32.mrf.mxu0
        %v2845 = vadd.f32 %v2826, %v2844
        %2846 = vdwg.mxu0
        %2847 = vmatpush.bf16.msra.mxu0 %v999
        %2848 = vmatpush.bf16.msra.mxu0 %v997
        %2849 = vmatpush.bf16.msra.mxu0 %v995
        %2850 = vmatpush.bf16.msra.mxu0 %v993
        %2851 = vmatpush.bf16.msra.mxu0 %v991
        %2852 = vmatpush.bf16.msra.mxu0 %v989
        %2853 = vmatpush.bf16.msra.mxu0 %v987
        %2854 = vmatpush.bf16.msra.mxu0 %v985
        %2855 = vmatmul.bf16.gmra.mxu0 %v2727
        %v2856 = vpop.f32.mrf.mxu0
        %v2857 = vadd.f32 %v2838, %v2856
        %v2858 = vpop.f32.mrf.mxu0
        %v2859 = vadd.f32 %v2840, %v2858
        %2860 = vmatmul.bf16.gmra.mxu0 %v2731
        %v2861 = vpop.f32.mrf.mxu0
        %v2862 = vadd.f32 %v2843, %v2861
        %v2863 = vpop.f32.mrf.mxu0
        %v2864 = vadd.f32 %v2845, %v2863
        %2865 = vdwg.mxu0
        %2866 = vmatpush.bf16.msra.mxu0 %v1015
        %2867 = vmatpush.bf16.msra.mxu0 %v1013
        %2868 = vmatpush.bf16.msra.mxu0 %v1011
        %2869 = vmatpush.bf16.msra.mxu0 %v1009
        %2870 = vmatpush.bf16.msra.mxu0 %v1007
        %2871 = vmatpush.bf16.msra.mxu0 %v1005
        %2872 = vmatpush.bf16.msra.mxu0 %v1003
        %2873 = vmatpush.bf16.msra.mxu0 %v1001
        %2874 = vmatmul.bf16.gmra.mxu0 %v2728
        %v2875 = vpop.f32.mrf.mxu0
        %v2876 = vadd.f32 %v2857, %v2875
        %v2877 = vpop.f32.mrf.mxu0
        %v2878 = vadd.f32 %v2859, %v2877
        %2879 = vmatmul.bf16.gmra.mxu0 %v2732
        %v2880 = vpop.f32.mrf.mxu0
        %v2881 = vadd.f32 %v2862, %v2880
        %v2882 = vpop.f32.mrf.mxu0
        %v2883 = vadd.f32 %v2864, %v2882
        %2884 = vdwg.mxu0
        %v2885 = vtanh.pop %v2800
        %v2886 = vtanh.pop %v2876
        %v2887 = vtanh.pop %v2802
        %v2888 = vtanh.pop %v2878
        %v2889 = vtanh.pop %v2805
        %v2890 = vtanh.pop %v2881
        %v2891 = vtanh.pop %v2807
        %v2892 = vtanh.pop %v2883
        %v2893 = vpack.c.bf16 %v2887, %v2885
        %v2894 = vpack.c.bf16 %v2888, %v2886
        %v2895 = vpack.c.bf16 %v2891, %v2889
        %v2896 = vpack.c.bf16 %v2892, %v2890
        %2897 = vmatpush.bf16.msra.mxu0 %v1359
        %2898 = vmatpush.bf16.msra.mxu0 %v1357
        %2899 = vmatpush.bf16.msra.mxu0 %v1355
        %2900 = vmatpush.bf16.msra.mxu0 %v1353
        %2901 = vmatpush.bf16.msra.mxu0 %v1351
        %2902 = vmatpush.bf16.msra.mxu0 %v1349
        %2903 = vmatpush.bf16.msra.mxu0 %v1347
        %2904 = vmatpush.bf16.msra.mxu0 %v1345
        %2905 = vmatmul.bf16.gmra.mxu0 %v2893
        %v2906 = vpop.f32.mrf.mxu0
        %v2907 = vadd.f32 %v1245, %v2906
        %v2908 = vpop.f32.mrf.mxu0
        %v2909 = vadd.f32 %v1245, %v2908
        %2910 = vmatmul.bf16.gmra.mxu0 %v2895
        %v2911 = vpop.f32.mrf.mxu0
        %v2912 = vadd.f32 %v1245, %v2911
        %v2913 = vpop.f32.mrf.mxu0
        %v2914 = vadd.f32 %v1245, %v2913
        %2915 = vdwg.mxu0
        %2916 = vmatpush.bf16.msra.mxu0 %v1375
        %2917 = vmatpush.bf16.msra.mxu0 %v1373
        %2918 = vmatpush.bf16.msra.mxu0 %v1371
        %2919 = vmatpush.bf16.msra.mxu0 %v1369
        %2920 = vmatpush.bf16.msra.mxu0 %v1367
        %2921 = vmatpush.bf16.msra.mxu0 %v1365
        %2922 = vmatpush.bf16.msra.mxu0 %v1363
        %2923 = vmatpush.bf16.msra.mxu0 %v1361
        %2924 = vmatmul.bf16.gmra.mxu0 %v2894
        %v2925 = vpop.f32.mrf.mxu0
        %v2926 = vadd.f32 %v2907, %v2925
        %v2927 = vpop.f32.mrf.mxu0
        %v2928 = vadd.f32 %v2909, %v2927
        %2929 = vmatmul.bf16.gmra.mxu0 %v2896
        %v2930 = vpop.f32.mrf.mxu0
        %v2931 = vadd.f32 %v2912, %v2930
        %v2932 = vpop.f32.mrf.mxu0
        %v2933 = vadd.f32 %v2914, %v2932
        %2934 = vdwg.mxu0
        %2935 = vmatpush.bf16.msra.mxu0 %v1360
        %2936 = vmatpush.bf16.msra.mxu0 %v1358
        %2937 = vmatpush.bf16.msra.mxu0 %v1356
        %2938 = vmatpush.bf16.msra.mxu0 %v1354
        %2939 = vmatpush.bf16.msra.mxu0 %v1352
        %2940 = vmatpush.bf16.msra.mxu0 %v1350
        %2941 = vmatpush.bf16.msra.mxu0 %v1348
        %2942 = vmatpush.bf16.msra.mxu0 %v1346
        %2943 = vmatmul.bf16.gmra.mxu0 %v2893
        %v2944 = vpop.f32.mrf.mxu0
        %v2945 = vadd.f32 %v1246, %v2944
        %v2946 = vpop.f32.mrf.mxu0
        %v2947 = vadd.f32 %v1246, %v2946
        %2948 = vmatmul.bf16.gmra.mxu0 %v2895
        %v2949 = vpop.f32.mrf.mxu0
        %v2950 = vadd.f32 %v1246, %v2949
        %v2951 = vpop.f32.mrf.mxu0
        %v2952 = vadd.f32 %v1246, %v2951
        %2953 = vdwg.mxu0
        %2954 = vmatpush.bf16.msra.mxu0 %v1376
        %2955 = vmatpush.bf16.msra.mxu0 %v1374
        %2956 = vmatpush.bf16.msra.mxu0 %v1372
        %2957 = vmatpush.bf16.msra.mxu0 %v1370
        %2958 = vmatpush.bf16.msra.mxu0 %v1368
        %2959 = vmatpush.bf16.msra.mxu0 %v1366
        %2960 = vmatpush.bf16.msra.mxu0 %v1364
        %2961 = vmatpush.bf16.msra.mxu0 %v1362
        %2962 = vmatmul.bf16.gmra.mxu0 %v2894
        %v2963 = vpop.f32.mrf.mxu0
        %v2964 = vadd.f32 %v2945, %v2963
        %v2965 = vpop.f32.mrf.mxu0
        %v2966 = vadd.f32 %v2947, %v2965
        %2967 = vmatmul.bf16.gmra.mxu0 %v2896
        %v2968 = vpop.f32.mrf.mxu0
        %v2969 = vadd.f32 %v2950, %v2968
        %v2970 = vpop.f32.mrf.mxu0
        %v2971 = vadd.f32 %v2952, %v2970
        %2972 = vdwg.mxu0
        %v2973 = vtanh.pop %v2926
        %v2974 = vtanh.pop %v2964
        %v2975 = vtanh.pop %v2928
        %v2976 = vtanh.pop %v2966
        %v2977 = vtanh.pop %v2931
        %v2978 = vtanh.pop %v2969
        %v2979 = vtanh.pop %v2933
        %v2980 = vtanh.pop %v2971
        %2981 = vst [vmem:[%s318 + $0x100] sm:$0xff] %v2973
        %2982 = vst [vmem:[%s318 + $0x108] sm:$0xff] %v2974
        %2983 = vst [vmem:[%s318 + $0x110] sm:$0xff] %v2975
        %2984 = vst [vmem:[%s318 + $0x118] sm:$0xff] %v2976
        %2985 = vst [vmem:[%s318 + $0x120] sm:$0xff] %v2977
        %2986 = vst [vmem:[%s318 + $0x128] sm:$0xff] %v2978
        %2987 = vst [vmem:[%s318 + $0x130] sm:$0xff] %v2979
        %2988 = vst [vmem:[%s318 + $0x138] sm:$0xff] %v2980
        %s2989 = sand.u32 %s183, 1
        %s2990 = scalar_lea.sflag [#allocation4], %s2989
        %s2991 = sand.u32 %s183, 1
        %s2992 = smul.addr %s2991, 320
        %s2993 = scalar_lea.vmem [#allocation7], %s2992
        // Predicated region
        $region57: #{a2c_shared_forward.1} parent=47 // pred_check
          %p2994 = pneg %p193
        $region58: #{a2c_shared_forward.1} parent=47 // pred_check_branch
          %2996 = sbr.rel (%p2994) target = $region60
        $region59: #{a2c_shared_forward.1} parent=47 // pred_region
          %s2997 = smul.u32 20, %s23
          %s2998 = ssub.s32 38, %s2997
          %p2999 = scmp.lt.s32.totalorder %s2998, 20
          %s3000 = scalar_select %p2999, %s2998, 20
          %s3001 = smul.u32 8, %s3000
          %s3002 = smul.u32 %s3001, 2
          %s3003 = ssub.s32 320, %s3002
          %s3004 = sshll.u32 %s3003, 4
          %3005 = vsyncadd %s2990, %s3004
          %p3006 = scmp.ne.s32.totalorder 0, %s3002
          %s3007 = smul.addr %s2997, 2
          %s3008 = smul.addr %s3007, 8
          %s3009 = scalar_lea.hbm %s7, %s3008
          %s3010 = smul.u32 16, %s3000
          %s3011 = sshll.u32 %s2993, 4
          %s3012 = int_to_ptr.vmem [resolvable:$true] %s3011
          %s3013 = sshll.u32 %s3009, 4
          %s3014 = int_to_ptr.hbm [resolvable:$true] %s3013
          %s3015 = sshll.u32 %s3010, 4
          %3019 = dma.vmem_to_hbm [thread:$0]  (%p3006), %s3012, %s3015, %s3014, %s2990, 256, 256, 16
        $region60: #{a2c_shared_forward.1} parent=47 // pred_fallthru
          _
      $region48: #{a2c_shared_forward.1} parent=5 // pred_fallthru
        _
      %p3020 = scmp.le.s32.totalorder 2, %s18
      // Predicated region
      $region61: #{a2c_shared_forward.1} parent=5 // pred_check
        %p3021 = pneg %p3020
      $region62: #{a2c_shared_forward.1} parent=5 // pred_check_branch
        %3023 = sbr.rel (%p3021) target = $region64
      $region63: #{a2c_shared_forward.1} parent=5 // pred_region
        %s3024 = ssub.s32 %s18, 2
        // Predicated region
        $region65: #{a2c_shared_forward.1} parent=63 // pred_check
          %p3025 = pneg %p199
        $region66: #{a2c_shared_forward.1} parent=63 // pred_check_branch
          %3027 = sbr.rel (%p3025) target = $region68
        $region67: #{a2c_shared_forward.1} parent=63 // pred_region
          %s3028 = sand.u32 %s184, 1
          %s3029 = scalar_lea.sflag [#allocation4], %s3028
          %s3030 = sand.u32 %s184, 1
          %s3031 = smul.addr %s3030, 320
          %s3032 = scalar_lea.vmem [#allocation7], %s3031
          %3034 = dma.done %s3029, 5120
        $region68: #{a2c_shared_forward.1} parent=63 // pred_fallthru
          _
      $region64: #{a2c_shared_forward.1} parent=5 // pred_fallthru
        _
    $region6: #{a2c_shared_forward.1} parent=1 // loop_footer
      %s22 = sadd.s32 1, %s18
    $region7: #{a2c_shared_forward.1} parent=1 // loop_footer_branch
      %17 = sbr.rel target = $region3
    $region8: #{a2c_shared_forward.1} parent=1 // loop_exit
      _
    %3035 = vsyncpa [#allocation3], 1
    %s3036 = scalar_lea.sflag [#allocation3], 1
    %3037 = vsyncpa %s3036, 1
    %3038 = vsyncpa [#allocation6], 1
    %3039 = vsyncpa [#allocation4], 1
    %s3040 = scalar_lea.sflag [#allocation4], 1
    %3041 = vsyncpa %s3040, 1

</llo_original>
